<compile_context>
chip_gen: v7x
topology: tpu7x:2x2x1
jax: 0.10.0
libtpu: 0.0.40
codegen_flags: <defaults>
</compile_context>

<pallas_src>
import functools
import math

import jax
import jax.numpy as jnp
from jax import lax
from jax.experimental import pallas as pl
from jax.experimental.pallas import tpu as pltpu


# --------------------------------------------------------------------------- #
# Kernel: one class-tile of sub-center ArcFace cosine logits
# --------------------------------------------------------------------------- #
def arc_kernel(embn_ref, warc_ref, cos_ref, *, k, c_tile):
    """embn_ref : [Bp, E]            bf16 normalized embeddings (resident across grid)
    warc_ref : [1, E, K*C_TILE]   bf16 pre-normalized weights, contiguous per tile
    cos_ref  : [Bp, C_TILE]       f32 max-over-K cosine logits
    """
    e = embn_ref[...]                                                 # [Bp, E]
    # Sub-center j occupies lane-aligned columns [j*C_TILE, (j+1)*C_TILE) of the
    # resident weight tile (static slices of the Ref -> zero-cost views).
    cos = jnp.dot(
        e, warc_ref[0, :, pl.ds(0, c_tile)], preferred_element_type=jnp.float32
    )
    for j in range(1, k):  # k is small & static (3) -> unrolled
        wj = warc_ref[0, :, pl.ds(j * c_tile, c_tile)]                # [E, C_TILE]
        cos = jnp.maximum(cos, jnp.dot(e, wj, preferred_element_type=jnp.float32))
    cos_ref[...] = cos


# --------------------------------------------------------------------------- #
# Parameter preprocessing (done ONCE at load time, not per forward)
# --------------------------------------------------------------------------- #
def prepare_head_params(w_emb, w_arc, k, c_tile):
    """Pre-normalize / pre-block head weights for the kernel.

    w_emb : [E, H]   nn.Linear(hidden, emb, bias=False).weight (torch layout)
    w_arc : [C*k, E] ArcMarginProduct_subcenter.weight, row index = c*k + j
    Returns:
      w_emb_t   [H, E]                  f32 (kept full precision for emb fidelity)
      w_arc_blk [T, E, k*C_TILE]        bf16, each grid tile is one contiguous block;
                                        column within a tile = j*C_TILE + local_class
      c_pad     padded class count (T * C_TILE)
    """
    w_emb_t = jnp.asarray(w_emb, jnp.float32).T                        # [H, E]

    ck, e = w_arc.shape
    c = ck // k
    w = jnp.asarray(w_arc, jnp.float32)
    # F.normalize per sub-center row.
    w = w / jnp.maximum(jnp.linalg.norm(w, axis=-1, keepdims=True), 1e-12)
    w = w.reshape(c, k, e)                                             # [C, k, E]
    c_pad = pl.cdiv(c, c_tile) * c_tile
    if c_pad != c:
        w = jnp.pad(w, ((0, c_pad - c), (0, 0), (0, 0)))
    n_tiles = c_pad // c_tile
    # [T, C_TILE, k, E] -> [T, E, k, C_TILE] -> [T, E, k*C_TILE]  (tile-contiguous)
    w = w.reshape(n_tiles, c_tile, k, e).transpose(0, 3, 2, 1)
    w = w.reshape(n_tiles, e, k * c_tile)
    return w_emb_t, w.astype(jnp.bfloat16), c_pad


# --------------------------------------------------------------------------- #
# Forward
# --------------------------------------------------------------------------- #
def head_forward(features, w_emb_t, w_arc_blk, n_classes, k, c_tile):
    """features: [B, H] f32. Returns (cos [B, n_classes] f32, emb_n [B, E] f32)."""
    b = features.shape[0]
    e = w_emb_t.shape[1]
    n_tiles = w_arc_blk.shape[0]
    c_pad = n_tiles * c_tile
    assert w_arc_blk.shape == (n_tiles, e, k * c_tile)

    # Embedding + L2 normalize in plain JAX, full f32 (tiny matmul, XLA fuses;
    # keeps the exported embedding output at f32 fidelity).
    emb = features.astype(jnp.float32) @ w_emb_t                       # [B, E]
    sumsq = jnp.sum(emb * emb, axis=-1, keepdims=True)
    emb_n = emb * lax.rsqrt(jnp.maximum(sumsq, 1e-24))                 # F.normalize

    # Pad batch to a full bf16 sublane tile so MXU rows / stores are unmasked.
    b_pad = max(16, ((b + 15) // 16) * 16)
    emb_n_p = emb_n if b_pad == b else jnp.pad(emb_n, ((0, b_pad - b), (0, 0)))
    emb_n_bf16 = emb_n_p.astype(jnp.bfloat16)

    # VMEM budget: double-buffered weight tile + output tile + resident embeddings,
    # with headroom; capped at 48 MiB for v7x's 64 MiB per-TC VMEM.
    w_blk_bytes = e * k * c_tile * 2          # bf16
    out_blk_bytes = b_pad * c_tile * 4        # f32
    vmem_limit = int(min(max(4 * (w_blk_bytes + out_blk_bytes), 16 << 20), 48 << 20))

    cos = pl.pallas_call(
        functools.partial(arc_kernel, k=k, c_tile=c_tile),
        out_shape=jax.ShapeDtypeStruct((b_pad, c_pad), jnp.float32),
        grid=(n_tiles,),
        in_specs=[
            pl.BlockSpec((b_pad, e), lambda ci: (0, 0)),              # resident
            pl.BlockSpec((1, e, k * c_tile), lambda ci: (ci, 0, 0)),  # streamed, contiguous
        ],
        out_specs=pl.BlockSpec((b_pad, c_tile), lambda ci: (0, ci)),
        compiler_params=pltpu.CompilerParams(
            dimension_semantics=("parallel",),   # v7x: shard C tiles over 2 TCs
            vmem_limit_bytes=vmem_limit,
        ),
    )(emb_n_bf16, w_arc_blk)

    return cos[:b, :n_classes], emb_n


def model_forward(x, params, n_classes, k, c_tile):
    """x: [B, 3, IMG, IMG] NCHW. Returns (arc_logits [B, C], normed_emb [B, E])."""
    # TODO(synk): real CLIP ViT `visual` backbone is an external dependency;
    # replaced with a deterministic linear projection stand-in (plain JAX glue).
    b = x.shape[0]
    feats = x.reshape(b, -1).astype(jnp.float32) @ params["w_backbone"]  # [B, H]
    return head_forward(
        feats, params["w_emb_t"], params["w_arc_blk"], n_classes, k, c_tile
    )


# --------------------------------------------------------------------------- #
# Parameter init (matches torch initializers) + pure-JAX reference
# --------------------------------------------------------------------------- #
def init_params(key, img_size, hidden_size, emb_size, n_classes, k, c_tile):
    k_bb, k_emb, k_arc = jax.random.split(key, 3)
    in_dim = 3 * img_size * img_size
    # Stand-in backbone projection.
    w_backbone = jax.random.normal(k_bb, (in_dim, hidden_size), jnp.float32) * 0.02
    # nn.Linear(hidden, emb, bias=False): weight [emb, hidden], U(+-1/sqrt(fan_in))
    bound_emb = 1.0 / math.sqrt(hidden_size)
    w_emb = jax.random.uniform(
        k_emb, (emb_size, hidden_size), jnp.float32, -bound_emb, bound_emb
    )
    # ArcMarginProduct_subcenter.weight: [n_classes*k, emb_size], U(+-1/sqrt(emb))
    bound_arc = 1.0 / math.sqrt(emb_size)
    w_arc = jax.random.uniform(
        k_arc, (n_classes * k, emb_size), jnp.float32, -bound_arc, bound_arc
    )
    w_emb_t, w_arc_blk, _ = prepare_head_params(w_emb, w_arc, k, c_tile)
    return {
        "w_backbone": w_backbone,
        "w_emb_t": w_emb_t,
        "w_arc_blk": w_arc_blk,
        # raw copies kept only for the reference check below
        "_w_emb_raw": w_emb,
        "_w_arc_raw": w_arc,
    }


def reference_forward(x, params, n_classes, k):
    b = x.shape[0]
    f = x.reshape(b, -1).astype(jnp.float32) @ params["w_backbone"]
    emb = f @ params["_w_emb_raw"].T
    emb_n = emb / jnp.maximum(jnp.linalg.norm(emb, axis=-1, keepdims=True), 1e-12)
    w = params["_w_arc_raw"]
    w_n = w / jnp.maximum(jnp.linalg.norm(w, axis=-1, keepdims=True), 1e-12)
    cos_all = emb_n @ w_n.T                              # [B, C*k]
    cos = cos_all.reshape(b, n_classes, k).max(axis=2)   # [B, C]
    return cos, emb_n


# --------------------------------------------------------------------------- #
if __name__ == "__main__":
    B, IMG = 2, 16
    HIDDEN, EMB, N_CLASSES, K = 64, 128, 2048, 3
    # Large C tile per the HBM-roofline sweep (>=1024; 2048 also fine on v6e/v7x).
    # Each grid step's weight block is one contiguous bf16 chunk of K*E*C_TILE.
    C_TILE = 1024  # grid of 2 over the class axis at this demo size

    key = jax.random.PRNGKey(0)
    k_params, k_x = jax.random.split(key)
    params = init_params(k_params, IMG, HIDDEN, EMB, N_CLASSES, K, C_TILE)
    x = jax.random.normal(k_x, (B, 3, IMG, IMG), jnp.float32)

    cos, emb_n = model_forward(x, params, N_CLASSES, K, C_TILE)
    jax.block_until_ready((cos, emb_n))

    assert cos.shape == (B, N_CLASSES)
    assert emb_n.shape == (B, EMB)

    # Reference check: emb path is f32 -> tight tolerance; cos uses bf16
    # embedding/weight operands on the MXU -> ~1e-2 tolerance.
    cos_ref, emb_n_ref = reference_forward(x, params, N_CLASSES, K)
    assert float(jnp.max(jnp.abs(emb_n - emb_n_ref))) < 1e-4
    assert float(jnp.max(jnp.abs(cos - cos_ref))) < 2e-2

    print("KERNEL_OK")
</pallas_src>

<mosaic_0001>
module attributes {stable_mosaic.version = 11 : i64} {
  func.func @arc_kernel(%arg0: i32, %arg1: memref<16x128xbf16, #tpu.memory_space<vmem>>, %arg2: memref<1x128x3072xbf16, #tpu.memory_space<vmem>>, %arg3: memref<16x1024xf32, #tpu.memory_space<vmem>>) attributes {dimension_semantics = [#tpu.dimension_semantics<parallel>], iteration_bounds = array<i64: 2>, scalar_prefetch = 0 : i64, scratch_operands = 0 : i64, tpu.core_type = #tpu.core_type<tc>, window_params = [{pipeline_mode = #tpu.pipeline_mode<synchronous>, transform_indices = @transform_0, window_bounds = array<i64: 16, 128>}, {transform_indices = @transform_1, window_bounds = array<i64: 1, 128, 3072>}, {transform_indices = @transform_2, window_bounds = array<i64: 16, 1024>}]} {
    %c0 = arith.constant 0 : index
    %c0_0 = arith.constant 0 : index
    %0 = vector.load %arg1[%c0, %c0_0] : memref<16x128xbf16, #tpu.memory_space<vmem>>, vector<16x128xbf16>
    %c0_1 = arith.constant 0 : index
    %c0_2 = arith.constant 0 : index
    %c0_3 = arith.constant 0 : index
    %1 = vector.load %arg2[%c0_1, %c0_2, %c0_3] : memref<1x128x3072xbf16, #tpu.memory_space<vmem>>, vector<1x128x1024xbf16>
    %2 = vector.shape_cast %1 : vector<1x128x1024xbf16> to vector<128x1024xbf16>
    %cst = arith.constant dense<0.000000e+00> : vector<16x1024xf32>
    %3 = tpu.matmul %0, %2, %cst {dimension_numbers = #tpu.dot_dimension_numbers<[1], [0], [0], [1], [0, 0, 1, 1], [], []>} : vector<16x128xbf16>, vector<128x1024xbf16>, vector<16x1024xf32> -> vector<16x1024xf32>
    %c0_4 = arith.constant 0 : index
    %c0_5 = arith.constant 0 : index
    %c1024 = arith.constant 1024 : index
    %4 = vector.load %arg2[%c0_4, %c0_5, %c1024] : memref<1x128x3072xbf16, #tpu.memory_space<vmem>>, vector<1x128x1024xbf16>
    %5 = vector.shape_cast %4 : vector<1x128x1024xbf16> to vector<128x1024xbf16>
    %cst_6 = arith.constant dense<0.000000e+00> : vector<16x1024xf32>
    %6 = tpu.matmul %0, %5, %cst_6 {dimension_numbers = #tpu.dot_dimension_numbers<[1], [0], [0], [1], [0, 0, 1, 1], [], []>} : vector<16x128xbf16>, vector<128x1024xbf16>, vector<16x1024xf32> -> vector<16x1024xf32>
    %7 = arith.maximumf %3, %6 : vector<16x1024xf32>
    %c0_7 = arith.constant 0 : index
    %c0_8 = arith.constant 0 : index
    %c2048 = arith.constant 2048 : index
    %8 = vector.load %arg2[%c0_7, %c0_8, %c2048] : memref<1x128x3072xbf16, #tpu.memory_space<vmem>>, vector<1x128x1024xbf16>
    %9 = vector.shape_cast %8 : vector<1x128x1024xbf16> to vector<128x1024xbf16>
    %cst_9 = arith.constant dense<0.000000e+00> : vector<16x1024xf32>
    %10 = tpu.matmul %0, %9, %cst_9 {dimension_numbers = #tpu.dot_dimension_numbers<[1], [0], [0], [1], [0, 0, 1, 1], [], []>} : vector<16x128xbf16>, vector<128x1024xbf16>, vector<16x1024xf32> -> vector<16x1024xf32>
    %11 = arith.maximumf %7, %10 : vector<16x1024xf32>
    %c0_10 = arith.constant 0 : index
    %c0_11 = arith.constant 0 : index
    %12 = vector.load %arg3[%c0_10, %c0_11] : memref<16x1024xf32, #tpu.memory_space<vmem>>, vector<16x1024xf32>
    tpu.vector_store %arg3[%c0_10, %c0_11], %11 {strides = array<i32>} : memref<16x1024xf32, #tpu.memory_space<vmem>>, vector<16x1024xf32>,
    return
  }
  func.func @transform_0(%arg0: i32) -> (i32, i32) {
    %c0_i32 = arith.constant 0 : i32
    %c0_i32_0 = arith.constant 0 : i32
    %c0_i32_1 = arith.constant 0 : i32
    return %c0_i32, %c0_i32_0 : i32, i32
  }
  func.func @transform_1(%arg0: i32) -> (i32, i32, i32) {
    %c0_i32 = arith.constant 0 : i32
    %c0_i32_0 = arith.constant 0 : i32
    %c0_i32_1 = arith.constant 0 : i32
    return %arg0, %c0_i32, %c0_i32_0 : i32, i32, i32
  }
  func.func @transform_2(%arg0: i32) -> (i32, i32) {
    %c0_i32 = arith.constant 0 : i32
    %c0_i32_0 = arith.constant 0 : i32
    return %c0_i32, %arg0 : i32, i32
  }
}

</mosaic_0001>

<llo_original>
// kernel: tpu_custom_call.1
$region0: #{tpu_custom_call.1}
  #allocation0 [shape = 'u32[]', space=smem, size = 0x4, offset = 0x4, fixed_abs, tag = 'smem constant byte address 0x4 - core index']
  #allocation1 [shape = 'u32[144,128]{1,0:T(1,128)}', space=vmem, size = 0x12000, scoped, tag = 'internal scratch']
  %s0 = inlined_call_operand.hbm [shape: bf16[16,128], index: 0, kind: input, shape index: {}]
  %s1 = inlined_call_operand.hbm [shape: bf16[2,128,3072], index: 1, kind: input, shape index: {}]
  %s2 = inlined_call_operand.hbm [shape: f32[16,2048], index: 2, kind: output, shape index: {}]
  %s3 = sld [smem:[#allocation0]]
  $region49: #{tpu_custom_call.1} parent=0
    _
  %s5 = ssub.s32 1, %s3
  %s6 = scalar_select 0, %s5, %s3
  $region1: #{tpu_custom_call.1} parent=0
    #allocation2 [shape = 'u8[4096]{0}', space=vmem, size = 0x1000, scoped, tag = 'input window, operand 0, single buffered']
    #allocation3 [shape = 's32[2]{0}', space=sflag, size = 0x8, scoped, tag = 'scoped memory for tpu_custom_call.1']
    #allocation4 [shape = 's32[2]{0}', space=sflag, size = 0x8, scoped, tag = 'scoped memory for tpu_custom_call.1']
    #allocation5 [shape = 'u8[1572864]{0}', space=vmem, size = 0x180000, scoped, tag = 'input window, operand 1']
    #allocation6 [shape = 's32[2]{0}', space=sflag, size = 0x8, scoped, tag = 'scoped memory for tpu_custom_call.1']
    #allocation7 [shape = 'u8[131072]{0}', space=vmem, size = 0x20000, scoped, tag = 'output window, operand 0']
    %7 = vsyncpa [#allocation3], 0
    %8 = vsyncpa [#allocation6], 0
    %s9 = scalar_lea.sflag [#allocation6], 1
    %10 = vsyncpa %s9, 0
    %11 = vsyncpa [#allocation4], 0
    %s12 = scalar_lea.sflag [#allocation4], 1
    %13 = vsyncpa %s12, 0
    loop: start=0, step=1, limit=4
    $region2: #{tpu_custom_call.1} parent=1 // loop_pre_header
      _
    $region3: #{tpu_custom_call.1} parent=1 // loop_header
      %s15 = sphi 0, %s19
      %p16 = scmp.ge.s32.totalorder %s15, 4
      %s23 = sphi 0, %s23
      %s25 = sphi 0, %s23
      %s26 = sphi 0, %s25
      %s40 = sphi 0, %s26
      %s46 = sphi 0, %s48
      %s49 = sphi 0, %s46
      %s50 = sphi 0, %s49
      %s66 = sphi 0, %s50
      %s72 = sphi 0, %s74
      %s75 = sphi 0, %s72
      %s76 = sphi 0, %s75
      %s92 = sphi 0, %s76
    $region4: #{tpu_custom_call.1} parent=1 // loop_header_branch
      %18 = sbr.rel (%p16) target = $region8
    $region5: #{tpu_custom_call.1} parent=1 // loop_body
      %s20 = ssub.s32 %s15, 1
      %s21 = ssub.s32 %s15, 2
      %s22 = sadd.s32 %s15, 1
      %s24 = sadd.s32 %s23, 1
      %p27 = scmp.eq.s32.totalorder %s15, 1
      %p28 = scmp.ne.s32.totalorder %s23, %s25
      %p29 = scmp.eq.s32.totalorder %s15, 0
      %p30 = por %p28, %p29
      %p31 = scmp.ne.s32.totalorder %s23, %s25
      %p32 = scmp.eq.s32.totalorder %s20, 1
      %p33 = por %p31, %p32
      %p34 = scmp.ne.s32.totalorder %s25, %s26
      %p35 = scmp.eq.s32.totalorder %s20, 0
      %p36 = por %p34, %p35
      %p37 = scmp.ne.s32.totalorder %s25, %s26
      %p38 = scmp.eq.s32.totalorder %s21, 1
      %p39 = por %p37, %p38
      %p41 = scmp.ne.s32.totalorder %s26, %s40
      %p42 = scmp.eq.s32.totalorder %s21, 0
      %p43 = por %p41, %p42
      %s44 = ssub.s32 %s15, %s22
      %p45 = scmp.eq.s32.totalorder %s44, 0
      %s47 = sadd.s32 %s46, 1
      %s48 = scalar_select %p45, %s46, %s47
      %p51 = pneg %p45
      %p52 = scmp.eq.s32.totalorder %s15, 1
      %p53 = por %p51, %p52
      %p54 = scmp.ne.s32.totalorder %s46, %s49
      %p55 = scmp.eq.s32.totalorder %s15, 0
      %p56 = por %p54, %p55
      %p57 = scmp.ne.s32.totalorder %s46, %s49
      %p58 = scmp.eq.s32.totalorder %s20, 1
      %p59 = por %p57, %p58
      %p60 = scmp.ne.s32.totalorder %s49, %s50
      %p61 = scmp.eq.s32.totalorder %s20, 0
      %p62 = por %p60, %p61
      %p63 = scmp.ne.s32.totalorder %s49, %s50
      %p64 = scmp.eq.s32.totalorder %s21, 1
      %p65 = por %p63, %p64
      %p67 = scmp.ne.s32.totalorder %s50, %s66
      %p68 = scmp.eq.s32.totalorder %s21, 0
      %p69 = por %p67, %p68
      %s70 = ssub.s32 %s15, %s22
      %p71 = scmp.eq.s32.totalorder %s70, 0
      %s73 = sadd.s32 %s72, 1
      %s74 = scalar_select %p71, %s72, %s73
      %p77 = pneg %p71
      %p78 = scmp.eq.s32.totalorder %s15, 1
      %p79 = por %p77, %p78
      %p80 = scmp.ne.s32.totalorder %s72, %s75
      %p81 = scmp.eq.s32.totalorder %s15, 0
      %p82 = por %p80, %p81
      %p83 = scmp.ne.s32.totalorder %s72, %s75
      %p84 = scmp.eq.s32.totalorder %s20, 1
      %p85 = por %p83, %p84
      %p86 = scmp.ne.s32.totalorder %s75, %s76
      %p87 = scmp.eq.s32.totalorder %s20, 0
      %p88 = por %p86, %p87
      %p89 = scmp.ne.s32.totalorder %s75, %s76
      %p90 = scmp.eq.s32.totalorder %s21, 1
      %p91 = por %p89, %p90
      %p93 = scmp.ne.s32.totalorder %s76, %s92
      %p94 = scmp.eq.s32.totalorder %s21, 0
      %p95 = por %p93, %p94
      %p96 = scmp.le.s32.totalorder 1, %s15
      %p97 = scmp.lt.s32.totalorder %s15, 3
      %p98 = pnand %p96, %p97
      %p99 = pneg %p98
      // Predicated region
      $region9: #{tpu_custom_call.1} parent=5 // pred_check
        _
      $region10: #{tpu_custom_call.1} parent=5 // pred_check_branch
        %101 = sbr.rel (%p98) target = $region12
      $region11: #{tpu_custom_call.1} parent=5 // pred_region
        %s102 = ssub.s32 %s15, 1
        // Predicated region
        $region13: #{tpu_custom_call.1} parent=11 // pred_check
          %p103 = pneg %p36
        $region14: #{tpu_custom_call.1} parent=11 // pred_check_branch
          %105 = sbr.rel (%p103) target = $region16
        $region15: #{tpu_custom_call.1} parent=11 // pred_region
          %s107 = ssub.s32 128, 128
          %108 = vsyncadd [#allocation3], %s107
          %s109 = sshll.u32 [#allocation2], 4
          %s110 = int_to_ptr.vmem [resolvable:$true] %s109
          %115 = dma.hbm_to_vmem [thread:$0]  %s0, 128, %s110, [#allocation3], 64, 64, 4
        $region16: #{tpu_custom_call.1} parent=11 // pred_fallthru
          _
      $region12: #{tpu_custom_call.1} parent=5 // pred_fallthru
        _
      %p116 = scmp.lt.s32.totalorder %s15, 2
      // Predicated region
      $region17: #{tpu_custom_call.1} parent=5 // pred_check
        %p117 = pneg %p116
      $region18: #{tpu_custom_call.1} parent=5 // pred_check_branch
        %119 = sbr.rel (%p117) target = $region20
      $region19: #{tpu_custom_call.1} parent=5 // pred_region
        // Predicated region
        $region21: #{tpu_custom_call.1} parent=19 // pred_check
          %p120 = pneg %p56
        $region22: #{tpu_custom_call.1} parent=19 // pred_check_branch
          %122 = sbr.rel (%p120) target = $region24
        $region23: #{tpu_custom_call.1} parent=19 // pred_region
          %s123 = sand.u32 %s46, 1
          %s124 = scalar_lea.sflag [#allocation6], %s123
          %s125 = sand.u32 %s46, 1
          %s126 = smul.addr %s125, 1536
          %s127 = scalar_lea.vmem [#allocation5], %s126
          %s129 = ssub.s32 24576, 24576
          %130 = vsyncadd %s124, %s129
          %s131 = smul.addr %s15, 384
          %s132 = smul.addr %s131, 64
          %s133 = scalar_lea.hbm %s1, %s132
          %s134 = sshll.u32 %s127, 4
          %s135 = int_to_ptr.vmem [resolvable:$true] %s134
          %140 = dma.hbm_to_vmem [thread:$0]  %s133, 24576, %s135, %s124, 1536, 1536, 96
        $region24: #{tpu_custom_call.1} parent=19 // pred_fallthru
          _
      $region20: #{tpu_custom_call.1} parent=5 // pred_fallthru
        _
      %p141 = scmp.le.s32.totalorder 1, %s15
      %p142 = scmp.lt.s32.totalorder %s15, 3
      %p143 = pnand %p141, %p142
      %p144 = pneg %p143
      // Predicated region
      $region25: #{tpu_custom_call.1} parent=5 // pred_check
        _
      $region26: #{tpu_custom_call.1} parent=5 // pred_check_branch
        %146 = sbr.rel (%p143) target = $region28
      $region27: #{tpu_custom_call.1} parent=5 // pred_region
        %s147 = ssub.s32 %s15, 1
        // Predicated region
        $region29: #{tpu_custom_call.1} parent=27 // pred_check
          %p148 = pneg %p36
        $region30: #{tpu_custom_call.1} parent=27 // pred_check_branch
          %150 = sbr.rel (%p148) target = $region32
        $region31: #{tpu_custom_call.1} parent=27 // pred_region
          %151 = dma.done [#allocation3], 128
        $region32: #{tpu_custom_call.1} parent=27 // pred_fallthru
          _
        %s152 = sand.u32 %s49, 1
        %s153 = scalar_lea.sflag [#allocation6], %s152
        %s154 = sand.u32 %s49, 1
        %s155 = smul.addr %s154, 1536
        %s156 = scalar_lea.vmem [#allocation5], %s155
        // Predicated region
        $region33: #{tpu_custom_call.1} parent=27 // pred_check
          %p157 = pneg %p62
        $region34: #{tpu_custom_call.1} parent=27 // pred_check_branch
          %159 = sbr.rel (%p157) target = $region36
        $region35: #{tpu_custom_call.1} parent=27 // pred_region
          %160 = dma.done %s153, 24576
        $region36: #{tpu_custom_call.1} parent=27 // pred_fallthru
          _
        %p161 = pneg %p36
        %p162 = pneg %p33
        %s163 = sand.u32 %s49, 1
        %s164 = scalar_lea.sflag [#allocation6], %s163
        %s165 = sand.u32 %s49, 1
        %s166 = smul.addr %s165, 1536
        %s167 = scalar_lea.vmem [#allocation5], %s166
        %p168 = pneg %p62
        %p169 = pneg %p59
        %p170 = pneg %p88
        %p171 = pneg %p85
        %s172 = sand.u32 %s75, 1
        %s173 = scalar_lea.sflag [#allocation4], %s172
        %s174 = sand.u32 %s75, 1
        %s175 = smul.addr %s174, 128
        %s176 = scalar_lea.vmem [#allocation7], %s175
        %s177 = smul.u32 8, %s20
        %v179 = vld [vmem:[#allocation2] sm:$0xf]
        %v180 = vld [vmem:[#allocation2 + $0x4] sm:$0xf]
        %v181 = vld [vmem:[%s156] sm:$0xff]
        %v182 = vld [vmem:[%s156 + $0x8] sm:$0xff]
        %v183 = vld [vmem:[%s156 + $0x10] sm:$0xff]
        %v184 = vld [vmem:[%s156 + $0x18] sm:$0xff]
        %v185 = vld [vmem:[%s156 + $0x60] sm:$0xff]
        %v186 = vld [vmem:[%s156 + $0x68] sm:$0xff]
        %v187 = vld [vmem:[%s156 + $0x70] sm:$0xff]
        %v188 = vld [vmem:[%s156 + $0x78] sm:$0xff]
        %v189 = vld [vmem:[%s156 + $0xc0] sm:$0xff]
        %v190 = vld [vmem:[%s156 + $0xc8] sm:$0xff]
        %v191 = vld [vmem:[%s156 + $0xd0] sm:$0xff]
        %v192 = vld [vmem:[%s156 + $0xd8] sm:$0xff]
        %v193 = vld [vmem:[%s156 + $0x120] sm:$0xff]
        %v194 = vld [vmem:[%s156 + $0x128] sm:$0xff]
        %v195 = vld [vmem:[%s156 + $0x130] sm:$0xff]
        %v196 = vld [vmem:[%s156 + $0x138] sm:$0xff]
        %v197 = vld [vmem:[%s156 + $0x180] sm:$0xff]
        %v198 = vld [vmem:[%s156 + $0x188] sm:$0xff]
        %v199 = vld [vmem:[%s156 + $0x190] sm:$0xff]
        %v200 = vld [vmem:[%s156 + $0x198] sm:$0xff]
        %v201 = vld [vmem:[%s156 + $0x1e0] sm:$0xff]
        %v202 = vld [vmem:[%s156 + $0x1e8] sm:$0xff]
        %v203 = vld [vmem:[%s156 + $0x1f0] sm:$0xff]
        %v204 = vld [vmem:[%s156 + $0x1f8] sm:$0xff]
        %v205 = vld [vmem:[%s156 + $0x240] sm:$0xff]
        %v206 = vld [vmem:[%s156 + $0x248] sm:$0xff]
        %v207 = vld [vmem:[%s156 + $0x250] sm:$0xff]
        %v208 = vld [vmem:[%s156 + $0x258] sm:$0xff]
        %v209 = vld [vmem:[%s156 + $0x2a0] sm:$0xff]
        %v210 = vld [vmem:[%s156 + $0x2a8] sm:$0xff]
        %v211 = vld [vmem:[%s156 + $0x2b0] sm:$0xff]
        %v212 = vld [vmem:[%s156 + $0x2b8] sm:$0xff]
        %v213 = vld [vmem:[%s156 + $0x300] sm:$0xff]
        %v214 = vld [vmem:[%s156 + $0x308] sm:$0xff]
        %v215 = vld [vmem:[%s156 + $0x310] sm:$0xff]
        %v216 = vld [vmem:[%s156 + $0x318] sm:$0xff]
        %v217 = vld [vmem:[%s156 + $0x360] sm:$0xff]
        %v218 = vld [vmem:[%s156 + $0x368] sm:$0xff]
        %v219 = vld [vmem:[%s156 + $0x370] sm:$0xff]
        %v220 = vld [vmem:[%s156 + $0x378] sm:$0xff]
        %v221 = vld [vmem:[%s156 + $0x3c0] sm:$0xff]
        %v222 = vld [vmem:[%s156 + $0x3c8] sm:$0xff]
        %v223 = vld [vmem:[%s156 + $0x3d0] sm:$0xff]
        %v224 = vld [vmem:[%s156 + $0x3d8] sm:$0xff]
        %v225 = vld [vmem:[%s156 + $0x420] sm:$0xff]
        %v226 = vld [vmem:[%s156 + $0x428] sm:$0xff]
        %v227 = vld [vmem:[%s156 + $0x430] sm:$0xff]
        %v228 = vld [vmem:[%s156 + $0x438] sm:$0xff]
        %v229 = vld [vmem:[%s156 + $0x480] sm:$0xff]
        %v230 = vld [vmem:[%s156 + $0x488] sm:$0xff]
        %v231 = vld [vmem:[%s156 + $0x490] sm:$0xff]
        %v232 = vld [vmem:[%s156 + $0x498] sm:$0xff]
        %v233 = vld [vmem:[%s156 + $0x4e0] sm:$0xff]
        %v234 = vld [vmem:[%s156 + $0x4e8] sm:$0xff]
        %v235 = vld [vmem:[%s156 + $0x4f0] sm:$0xff]
        %v236 = vld [vmem:[%s156 + $0x4f8] sm:$0xff]
        %v237 = vld [vmem:[%s156 + $0x540] sm:$0xff]
        %v238 = vld [vmem:[%s156 + $0x548] sm:$0xff]
        %v239 = vld [vmem:[%s156 + $0x550] sm:$0xff]
        %v240 = vld [vmem:[%s156 + $0x558] sm:$0xff]
        %v241 = vld [vmem:[%s156 + $0x5a0] sm:$0xff]
        %v242 = vld [vmem:[%s156 + $0x5a8] sm:$0xff]
        %v243 = vld [vmem:[%s156 + $0x5b0] sm:$0xff]
        %v244 = vld [vmem:[%s156 + $0x5b8] sm:$0xff]
        %v247 = vunpack.c.l.b16 %v179
        %v248 = vunpack.c.l.b16 %v180
        %v249 = vpack.c.b16 %v248, %v247
        %v315 = vunpack.c.l.b16 %v181
        %v316 = vunpack.c.h.b16 %v181
        %v317 = vunpack.c.l.b16 %v182
        %v318 = vunpack.c.h.b16 %v182
        %v319 = vunpack.c.l.b16 %v183
        %v320 = vunpack.c.h.b16 %v183
        %v321 = vunpack.c.l.b16 %v184
        %v322 = vunpack.c.h.b16 %v184
        %v323 = vunpack.c.l.b16 %v185
        %v324 = vunpack.c.h.b16 %v185
        %v325 = vunpack.c.l.b16 %v186
        %v326 = vunpack.c.h.b16 %v186
        %v327 = vunpack.c.l.b16 %v187
        %v328 = vunpack.c.h.b16 %v187
        %v329 = vunpack.c.l.b16 %v188
        %v330 = vunpack.c.h.b16 %v188
        %v331 = vunpack.c.l.b16 %v189
        %v332 = vunpack.c.h.b16 %v189
        %v333 = vunpack.c.l.b16 %v190
        %v334 = vunpack.c.h.b16 %v190
        %v335 = vunpack.c.l.b16 %v191
        %v336 = vunpack.c.h.b16 %v191
        %v337 = vunpack.c.l.b16 %v192
        %v338 = vunpack.c.h.b16 %v192
        %v339 = vunpack.c.l.b16 %v193
        %v340 = vunpack.c.h.b16 %v193
        %v341 = vunpack.c.l.b16 %v194
        %v342 = vunpack.c.h.b16 %v194
        %v343 = vunpack.c.l.b16 %v195
        %v344 = vunpack.c.h.b16 %v195
        %v345 = vunpack.c.l.b16 %v196
        %v346 = vunpack.c.h.b16 %v196
        %v347 = vunpack.c.l.b16 %v197
        %v348 = vunpack.c.h.b16 %v197
        %v349 = vunpack.c.l.b16 %v198
        %v350 = vunpack.c.h.b16 %v198
        %v351 = vunpack.c.l.b16 %v199
        %v352 = vunpack.c.h.b16 %v199
        %v353 = vunpack.c.l.b16 %v200
        %v354 = vunpack.c.h.b16 %v200
        %v355 = vunpack.c.l.b16 %v201
        %v356 = vunpack.c.h.b16 %v201
        %v357 = vunpack.c.l.b16 %v202
        %v358 = vunpack.c.h.b16 %v202
        %v359 = vunpack.c.l.b16 %v203
        %v360 = vunpack.c.h.b16 %v203
        %v361 = vunpack.c.l.b16 %v204
        %v362 = vunpack.c.h.b16 %v204
        %v363 = vunpack.c.l.b16 %v205
        %v364 = vunpack.c.h.b16 %v205
        %v365 = vunpack.c.l.b16 %v206
        %v366 = vunpack.c.h.b16 %v206
        %v367 = vunpack.c.l.b16 %v207
        %v368 = vunpack.c.h.b16 %v207
        %v369 = vunpack.c.l.b16 %v208
        %v370 = vunpack.c.h.b16 %v208
        %v371 = vunpack.c.l.b16 %v209
        %v372 = vunpack.c.h.b16 %v209
        %v373 = vunpack.c.l.b16 %v210
        %v374 = vunpack.c.h.b16 %v210
        %v375 = vunpack.c.l.b16 %v211
        %v376 = vunpack.c.h.b16 %v211
        %v377 = vunpack.c.l.b16 %v212
        %v378 = vunpack.c.h.b16 %v212
        %v379 = vunpack.c.l.b16 %v213
        %v380 = vunpack.c.h.b16 %v213
        %v381 = vunpack.c.l.b16 %v214
        %v382 = vunpack.c.h.b16 %v214
        %v383 = vunpack.c.l.b16 %v215
        %v384 = vunpack.c.h.b16 %v215
        %v385 = vunpack.c.l.b16 %v216
        %v386 = vunpack.c.h.b16 %v216
        %v387 = vunpack.c.l.b16 %v217
        %v388 = vunpack.c.h.b16 %v217
        %v389 = vunpack.c.l.b16 %v218
        %v390 = vunpack.c.h.b16 %v218
        %v391 = vunpack.c.l.b16 %v219
        %v392 = vunpack.c.h.b16 %v219
        %v393 = vunpack.c.l.b16 %v220
        %v394 = vunpack.c.h.b16 %v220
        %v395 = vunpack.c.l.b16 %v221
        %v396 = vunpack.c.h.b16 %v221
        %v397 = vunpack.c.l.b16 %v222
        %v398 = vunpack.c.h.b16 %v222
        %v399 = vunpack.c.l.b16 %v223
        %v400 = vunpack.c.h.b16 %v223
        %v401 = vunpack.c.l.b16 %v224
        %v402 = vunpack.c.h.b16 %v224
        %v403 = vunpack.c.l.b16 %v225
        %v404 = vunpack.c.h.b16 %v225
        %v405 = vunpack.c.l.b16 %v226
        %v406 = vunpack.c.h.b16 %v226
        %v407 = vunpack.c.l.b16 %v227
        %v408 = vunpack.c.h.b16 %v227
        %v409 = vunpack.c.l.b16 %v228
        %v410 = vunpack.c.h.b16 %v228
        %v411 = vunpack.c.l.b16 %v229
        %v412 = vunpack.c.h.b16 %v229
        %v413 = vunpack.c.l.b16 %v230
        %v414 = vunpack.c.h.b16 %v230
        %v415 = vunpack.c.l.b16 %v231
        %v416 = vunpack.c.h.b16 %v231
        %v417 = vunpack.c.l.b16 %v232
        %v418 = vunpack.c.h.b16 %v232
        %v419 = vunpack.c.l.b16 %v233
        %v420 = vunpack.c.h.b16 %v233
        %v421 = vunpack.c.l.b16 %v234
        %v422 = vunpack.c.h.b16 %v234
        %v423 = vunpack.c.l.b16 %v235
        %v424 = vunpack.c.h.b16 %v235
        %v425 = vunpack.c.l.b16 %v236
        %v426 = vunpack.c.h.b16 %v236
        %v427 = vunpack.c.l.b16 %v237
        %v428 = vunpack.c.h.b16 %v237
        %v429 = vunpack.c.l.b16 %v238
        %v430 = vunpack.c.h.b16 %v238
        %v431 = vunpack.c.l.b16 %v239
        %v432 = vunpack.c.h.b16 %v239
        %v433 = vunpack.c.l.b16 %v240
        %v434 = vunpack.c.h.b16 %v240
        %v435 = vunpack.c.l.b16 %v241
        %v436 = vunpack.c.h.b16 %v241
        %v437 = vunpack.c.l.b16 %v242
        %v438 = vunpack.c.h.b16 %v242
        %v439 = vunpack.c.l.b16 %v243
        %v440 = vunpack.c.h.b16 %v243
        %v441 = vunpack.c.l.b16 %v244
        %v442 = vunpack.c.h.b16 %v244
        %v443 = vpack.c.b16 %v323, %v315
        %v444 = vpack.c.b16 %v324, %v316
        %v445 = vpack.c.b16 %v325, %v317
        %v446 = vpack.c.b16 %v326, %v318
        %v447 = vpack.c.b16 %v327, %v319
        %v448 = vpack.c.b16 %v328, %v320
        %v449 = vpack.c.b16 %v329, %v321
        %v450 = vpack.c.b16 %v330, %v322
        %v451 = vpack.c.b16 %v339, %v331
        %v452 = vpack.c.b16 %v340, %v332
        %v453 = vpack.c.b16 %v341, %v333
        %v454 = vpack.c.b16 %v342, %v334
        %v455 = vpack.c.b16 %v343, %v335
        %v456 = vpack.c.b16 %v344, %v336
        %v457 = vpack.c.b16 %v345, %v337
        %v458 = vpack.c.b16 %v346, %v338
        %v459 = vpack.c.b16 %v355, %v347
        %v460 = vpack.c.b16 %v356, %v348
        %v461 = vpack.c.b16 %v357, %v349
        %v462 = vpack.c.b16 %v358, %v350
        %v463 = vpack.c.b16 %v359, %v351
        %v464 = vpack.c.b16 %v360, %v352
        %v465 = vpack.c.b16 %v361, %v353
        %v466 = vpack.c.b16 %v362, %v354
        %v467 = vpack.c.b16 %v371, %v363
        %v468 = vpack.c.b16 %v372, %v364
        %v469 = vpack.c.b16 %v373, %v365
        %v470 = vpack.c.b16 %v374, %v366
        %v471 = vpack.c.b16 %v375, %v367
        %v472 = vpack.c.b16 %v376, %v368
        %v473 = vpack.c.b16 %v377, %v369
        %v474 = vpack.c.b16 %v378, %v370
        %v475 = vpack.c.b16 %v387, %v379
        %v476 = vpack.c.b16 %v388, %v380
        %v477 = vpack.c.b16 %v389, %v381
        %v478 = vpack.c.b16 %v390, %v382
        %v479 = vpack.c.b16 %v391, %v383
        %v480 = vpack.c.b16 %v392, %v384
        %v481 = vpack.c.b16 %v393, %v385
        %v482 = vpack.c.b16 %v394, %v386
        %v483 = vpack.c.b16 %v403, %v395
        %v484 = vpack.c.b16 %v404, %v396
        %v485 = vpack.c.b16 %v405, %v397
        %v486 = vpack.c.b16 %v406, %v398
        %v487 = vpack.c.b16 %v407, %v399
        %v488 = vpack.c.b16 %v408, %v400
        %v489 = vpack.c.b16 %v409, %v401
        %v490 = vpack.c.b16 %v410, %v402
        %v491 = vpack.c.b16 %v419, %v411
        %v492 = vpack.c.b16 %v420, %v412
        %v493 = vpack.c.b16 %v421, %v413
        %v494 = vpack.c.b16 %v422, %v414
        %v495 = vpack.c.b16 %v423, %v415
        %v496 = vpack.c.b16 %v424, %v416
        %v497 = vpack.c.b16 %v425, %v417
        %v498 = vpack.c.b16 %v426, %v418
        %v499 = vpack.c.b16 %v435, %v427
        %v500 = vpack.c.b16 %v436, %v428
        %v501 = vpack.c.b16 %v437, %v429
        %v502 = vpack.c.b16 %v438, %v430
        %v503 = vpack.c.b16 %v439, %v431
        %v504 = vpack.c.b16 %v440, %v432
        %v505 = vpack.c.b16 %v441, %v433
        %v506 = vpack.c.b16 %v442, %v434
        %571 = vmatprep.subr.bf16.mxu0 %v444
        %572 = vmatpush1.bf16.msra.mxu0 %v443
        %573 = vmatprep.subr.bf16.mxu0 %v452
        %574 = vmatpush1.bf16.msra.mxu0 %v451
        %575 = vmatprep.subr.bf16.mxu0 %v460
        %576 = vmatpush1.bf16.msra.mxu0 %v459
        %577 = vmatprep.subr.bf16.mxu0 %v468
        %578 = vmatpush1.bf16.msra.mxu0 %v467
        %579 = vmatprep.subr.bf16.mxu0 %v476
        %580 = vmatpush1.bf16.msra.mxu0 %v475
        %581 = vmatprep.subr.bf16.mxu0 %v484
        %582 = vmatpush1.bf16.msra.mxu0 %v483
        %583 = vmatprep.subr.bf16.mxu0 %v492
        %584 = vmatpush1.bf16.msra.mxu0 %v491
        %585 = vmatprep.subr.bf16.mxu0 %v500
        %586 = vmatpush1.bf16.msra.mxu0 %v499
        %587 = vmatprep.subr.bf16.mxu0 0
        %588 = vmatpush1.bf16.msra.mxu0 0
        %589 = vmatprep.subr.bf16.mxu0 0
        %590 = vmatpush1.bf16.msra.mxu0 0
        %591 = vmatprep.subr.bf16.mxu0 0
        %592 = vmatpush1.bf16.msra.mxu0 0
        %593 = vmatprep.subr.bf16.mxu0 0
        %594 = vmatpush1.bf16.msra.mxu0 0
        %595 = vmatprep.subr.bf16.mxu0 0
        %596 = vmatpush1.bf16.msra.mxu0 0
        %597 = vmatprep.subr.bf16.mxu0 0
        %598 = vmatpush1.bf16.msra.mxu0 0
        %599 = vmatprep.subr.bf16.mxu0 0
        %600 = vmatpush1.bf16.msra.mxu0 0
        %601 = vmatprep.subr.bf16.mxu0 0
        %602 = vmatpush1.bf16.msra.mxu0 0
        %603 = vmatprep.mubr.bf16.mxu0 0
        %604 = vmatmul.mubr.bf16.gmra.mrb[0].mxu0 %v249
        %v605 = vpop.f32.mrb[0].mxu0
        %v606 = vadd.f32 0.0, %v605
        %v607 = vpop.f32.mrb[0].mxu0
        %v608 = vadd.f32 0.0, %v607
        %v609 = vpop.f32.mrb[0].mxu0
        %v610 = vadd.f32 0.0, %v609
        %v611 = vpop.f32.mrb[0].mxu0
        %v612 = vadd.f32 0.0, %v611
        %613 = vdwg.mxu0
        %614 = vmatprep.subr.bf16.mxu0 %v446
        %615 = vmatpush1.bf16.msra.mxu0 %v445
        %616 = vmatprep.subr.bf16.mxu0 %v454
        %617 = vmatpush1.bf16.msra.mxu0 %v453
        %618 = vmatprep.subr.bf16.mxu0 %v462
        %619 = vmatpush1.bf16.msra.mxu0 %v461
        %620 = vmatprep.subr.bf16.mxu0 %v470
        %621 = vmatpush1.bf16.msra.mxu0 %v469
        %622 = vmatprep.subr.bf16.mxu0 %v478
        %623 = vmatpush1.bf16.msra.mxu0 %v477
        %624 = vmatprep.subr.bf16.mxu0 %v486
        %625 = vmatpush1.bf16.msra.mxu0 %v485
        %626 = vmatprep.subr.bf16.mxu0 %v494
        %627 = vmatpush1.bf16.msra.mxu0 %v493
        %628 = vmatprep.subr.bf16.mxu0 %v502
        %629 = vmatpush1.bf16.msra.mxu0 %v501
        %630 = vmatprep.subr.bf16.mxu0 0
        %631 = vmatpush1.bf16.msra.mxu0 0
        %632 = vmatprep.subr.bf16.mxu0 0
        %633 = vmatpush1.bf16.msra.mxu0 0
        %634 = vmatprep.subr.bf16.mxu0 0
        %635 = vmatpush1.bf16.msra.mxu0 0
        %636 = vmatprep.subr.bf16.mxu0 0
        %637 = vmatpush1.bf16.msra.mxu0 0
        %638 = vmatprep.subr.bf16.mxu0 0
        %639 = vmatpush1.bf16.msra.mxu0 0
        %640 = vmatprep.subr.bf16.mxu0 0
        %641 = vmatpush1.bf16.msra.mxu0 0
        %642 = vmatprep.subr.bf16.mxu0 0
        %643 = vmatpush1.bf16.msra.mxu0 0
        %644 = vmatprep.subr.bf16.mxu0 0
        %645 = vmatpush1.bf16.msra.mxu0 0
        %646 = vmatprep.mubr.bf16.mxu0 0
        %647 = vmatmul.mubr.bf16.gmra.mrb[0].mxu0 %v249
        %v648 = vpop.f32.mrb[0].mxu0
        %v649 = vadd.f32 0.0, %v648
        %v650 = vpop.f32.mrb[0].mxu0
        %v651 = vadd.f32 0.0, %v650
        %v652 = vpop.f32.mrb[0].mxu0
        %v653 = vadd.f32 0.0, %v652
        %v654 = vpop.f32.mrb[0].mxu0
        %v655 = vadd.f32 0.0, %v654
        %656 = vdwg.mxu0
        %657 = vmatprep.subr.bf16.mxu0 %v448
        %658 = vmatpush1.bf16.msra.mxu0 %v447
        %659 = vmatprep.subr.bf16.mxu0 %v456
        %660 = vmatpush1.bf16.msra.mxu0 %v455
        %661 = vmatprep.subr.bf16.mxu0 %v464
        %662 = vmatpush1.bf16.msra.mxu0 %v463
        %663 = vmatprep.subr.bf16.mxu0 %v472
        %664 = vmatpush1.bf16.msra.mxu0 %v471
        %665 = vmatprep.subr.bf16.mxu0 %v480
        %666 = vmatpush1.bf16.msra.mxu0 %v479
        %667 = vmatprep.subr.bf16.mxu0 %v488
        %668 = vmatpush1.bf16.msra.mxu0 %v487
        %669 = vmatprep.subr.bf16.mxu0 %v496
        %670 = vmatpush1.bf16.msra.mxu0 %v495
        %671 = vmatprep.subr.bf16.mxu0 %v504
        %672 = vmatpush1.bf16.msra.mxu0 %v503
        %673 = vmatprep.subr.bf16.mxu0 0
        %674 = vmatpush1.bf16.msra.mxu0 0
        %675 = vmatprep.subr.bf16.mxu0 0
        %676 = vmatpush1.bf16.msra.mxu0 0
        %677 = vmatprep.subr.bf16.mxu0 0
        %678 = vmatpush1.bf16.msra.mxu0 0
        %679 = vmatprep.subr.bf16.mxu0 0
        %680 = vmatpush1.bf16.msra.mxu0 0
        %681 = vmatprep.subr.bf16.mxu0 0
        %682 = vmatpush1.bf16.msra.mxu0 0
        %683 = vmatprep.subr.bf16.mxu0 0
        %684 = vmatpush1.bf16.msra.mxu0 0
        %685 = vmatprep.subr.bf16.mxu0 0
        %686 = vmatpush1.bf16.msra.mxu0 0
        %687 = vmatprep.subr.bf16.mxu0 0
        %688 = vmatpush1.bf16.msra.mxu0 0
        %689 = vmatprep.mubr.bf16.mxu0 0
        %690 = vmatmul.mubr.bf16.gmra.mrb[0].mxu0 %v249
        %v691 = vpop.f32.mrb[0].mxu0
        %v692 = vadd.f32 0.0, %v691
        %v693 = vpop.f32.mrb[0].mxu0
        %v694 = vadd.f32 0.0, %v693
        %v695 = vpop.f32.mrb[0].mxu0
        %v696 = vadd.f32 0.0, %v695
        %v697 = vpop.f32.mrb[0].mxu0
        %v698 = vadd.f32 0.0, %v697
        %699 = vdwg.mxu0
        %700 = vmatprep.subr.bf16.mxu0 %v450
        %701 = vmatpush1.bf16.msra.mxu0 %v449
        %702 = vmatprep.subr.bf16.mxu0 %v458
        %703 = vmatpush1.bf16.msra.mxu0 %v457
        %704 = vmatprep.subr.bf16.mxu0 %v466
        %705 = vmatpush1.bf16.msra.mxu0 %v465
        %706 = vmatprep.subr.bf16.mxu0 %v474
        %707 = vmatpush1.bf16.msra.mxu0 %v473
        %708 = vmatprep.subr.bf16.mxu0 %v482
        %709 = vmatpush1.bf16.msra.mxu0 %v481
        %710 = vmatprep.subr.bf16.mxu0 %v490
        %711 = vmatpush1.bf16.msra.mxu0 %v489
        %712 = vmatprep.subr.bf16.mxu0 %v498
        %713 = vmatpush1.bf16.msra.mxu0 %v497
        %714 = vmatprep.subr.bf16.mxu0 %v506
        %715 = vmatpush1.bf16.msra.mxu0 %v505
        %716 = vmatprep.subr.bf16.mxu0 0
        %717 = vmatpush1.bf16.msra.mxu0 0
        %718 = vmatprep.subr.bf16.mxu0 0
        %719 = vmatpush1.bf16.msra.mxu0 0
        %720 = vmatprep.subr.bf16.mxu0 0
        %721 = vmatpush1.bf16.msra.mxu0 0
        %722 = vmatprep.subr.bf16.mxu0 0
        %723 = vmatpush1.bf16.msra.mxu0 0
        %724 = vmatprep.subr.bf16.mxu0 0
        %725 = vmatpush1.bf16.msra.mxu0 0
        %726 = vmatprep.subr.bf16.mxu0 0
        %727 = vmatpush1.bf16.msra.mxu0 0
        %728 = vmatprep.subr.bf16.mxu0 0
        %729 = vmatpush1.bf16.msra.mxu0 0
        %730 = vmatprep.subr.bf16.mxu0 0
        %731 = vmatpush1.bf16.msra.mxu0 0
        %732 = vmatprep.mubr.bf16.mxu0 0
        %733 = vmatmul.mubr.bf16.gmra.mrb[0].mxu0 %v249
        %v734 = vpop.f32.mrb[0].mxu0
        %v735 = vadd.f32 0.0, %v734
        %v736 = vpop.f32.mrb[0].mxu0
        %v737 = vadd.f32 0.0, %v736
        %v738 = vpop.f32.mrb[0].mxu0
        %v739 = vadd.f32 0.0, %v738
        %v740 = vpop.f32.mrb[0].mxu0
        %v741 = vadd.f32 0.0, %v740
        %742 = vdwg.mxu0
        %v743 = vld [vmem:[%s156 + $0x20] sm:$0xff]
        %v744 = vld [vmem:[%s156 + $0x28] sm:$0xff]
        %v745 = vld [vmem:[%s156 + $0x30] sm:$0xff]
        %v746 = vld [vmem:[%s156 + $0x38] sm:$0xff]
        %v747 = vld [vmem:[%s156 + $0x80] sm:$0xff]
        %v748 = vld [vmem:[%s156 + $0x88] sm:$0xff]
        %v749 = vld [vmem:[%s156 + $0x90] sm:$0xff]
        %v750 = vld [vmem:[%s156 + $0x98] sm:$0xff]
        %v751 = vld [vmem:[%s156 + $0xe0] sm:$0xff]
        %v752 = vld [vmem:[%s156 + $0xe8] sm:$0xff]
        %v753 = vld [vmem:[%s156 + $0xf0] sm:$0xff]
        %v754 = vld [vmem:[%s156 + $0xf8] sm:$0xff]
        %v755 = vld [vmem:[%s156 + $0x140] sm:$0xff]
        %v756 = vld [vmem:[%s156 + $0x148] sm:$0xff]
        %v757 = vld [vmem:[%s156 + $0x150] sm:$0xff]
        %v758 = vld [vmem:[%s156 + $0x158] sm:$0xff]
        %v759 = vld [vmem:[%s156 + $0x1a0] sm:$0xff]
        %v760 = vld [vmem:[%s156 + $0x1a8] sm:$0xff]
        %v761 = vld [vmem:[%s156 + $0x1b0] sm:$0xff]
        %v762 = vld [vmem:[%s156 + $0x1b8] sm:$0xff]
        %v763 = vld [vmem:[%s156 + $0x200] sm:$0xff]
        %v764 = vld [vmem:[%s156 + $0x208] sm:$0xff]
        %v765 = vld [vmem:[%s156 + $0x210] sm:$0xff]
        %v766 = vld [vmem:[%s156 + $0x218] sm:$0xff]
        %v767 = vld [vmem:[%s156 + $0x260] sm:$0xff]
        %v768 = vld [vmem:[%s156 + $0x268] sm:$0xff]
        %v769 = vld [vmem:[%s156 + $0x270] sm:$0xff]
        %v770 = vld [vmem:[%s156 + $0x278] sm:$0xff]
        %v771 = vld [vmem:[%s156 + $0x2c0] sm:$0xff]
        %v772 = vld [vmem:[%s156 + $0x2c8] sm:$0xff]
        %v773 = vld [vmem:[%s156 + $0x2d0] sm:$0xff]
        %v774 = vld [vmem:[%s156 + $0x2d8] sm:$0xff]
        %v775 = vld [vmem:[%s156 + $0x320] sm:$0xff]
        %v776 = vld [vmem:[%s156 + $0x328] sm:$0xff]
        %v777 = vld [vmem:[%s156 + $0x330] sm:$0xff]
        %v778 = vld [vmem:[%s156 + $0x338] sm:$0xff]
        %v779 = vld [vmem:[%s156 + $0x380] sm:$0xff]
        %v780 = vld [vmem:[%s156 + $0x388] sm:$0xff]
        %v781 = vld [vmem:[%s156 + $0x390] sm:$0xff]
        %v782 = vld [vmem:[%s156 + $0x398] sm:$0xff]
        %v783 = vld [vmem:[%s156 + $0x3e0] sm:$0xff]
        %v784 = vld [vmem:[%s156 + $0x3e8] sm:$0xff]
        %v785 = vld [vmem:[%s156 + $0x3f0] sm:$0xff]
        %v786 = vld [vmem:[%s156 + $0x3f8] sm:$0xff]
        %v787 = vld [vmem:[%s156 + $0x440] sm:$0xff]
        %v788 = vld [vmem:[%s156 + $0x448] sm:$0xff]
        %v789 = vld [vmem:[%s156 + $0x450] sm:$0xff]
        %v790 = vld [vmem:[%s156 + $0x458] sm:$0xff]
        %v791 = vld [vmem:[%s156 + $0x4a0] sm:$0xff]
        %v792 = vld [vmem:[%s156 + $0x4a8] sm:$0xff]
        %v793 = vld [vmem:[%s156 + $0x4b0] sm:$0xff]
        %v794 = vld [vmem:[%s156 + $0x4b8] sm:$0xff]
        %v795 = vld [vmem:[%s156 + $0x500] sm:$0xff]
        %v796 = vld [vmem:[%s156 + $0x508] sm:$0xff]
        %v797 = vld [vmem:[%s156 + $0x510] sm:$0xff]
        %v798 = vld [vmem:[%s156 + $0x518] sm:$0xff]
        %v799 = vld [vmem:[%s156 + $0x560] sm:$0xff]
        %v800 = vld [vmem:[%s156 + $0x568] sm:$0xff]
        %v801 = vld [vmem:[%s156 + $0x570] sm:$0xff]
        %v802 = vld [vmem:[%s156 + $0x578] sm:$0xff]
        %v803 = vld [vmem:[%s156 + $0x5c0] sm:$0xff]
        %v804 = vld [vmem:[%s156 + $0x5c8] sm:$0xff]
        %v805 = vld [vmem:[%s156 + $0x5d0] sm:$0xff]
        %v806 = vld [vmem:[%s156 + $0x5d8] sm:$0xff]
        %v871 = vunpack.c.l.b16 %v743
        %v872 = vunpack.c.h.b16 %v743
        %v873 = vunpack.c.l.b16 %v744
        %v874 = vunpack.c.h.b16 %v744
        %v875 = vunpack.c.l.b16 %v745
        %v876 = vunpack.c.h.b16 %v745
        %v877 = vunpack.c.l.b16 %v746
        %v878 = vunpack.c.h.b16 %v746
        %v879 = vunpack.c.l.b16 %v747
        %v880 = vunpack.c.h.b16 %v747
        %v881 = vunpack.c.l.b16 %v748
        %v882 = vunpack.c.h.b16 %v748
        %v883 = vunpack.c.l.b16 %v749
        %v884 = vunpack.c.h.b16 %v749
        %v885 = vunpack.c.l.b16 %v750
        %v886 = vunpack.c.h.b16 %v750
        %v887 = vunpack.c.l.b16 %v751
        %v888 = vunpack.c.h.b16 %v751
        %v889 = vunpack.c.l.b16 %v752
        %v890 = vunpack.c.h.b16 %v752
        %v891 = vunpack.c.l.b16 %v753
        %v892 = vunpack.c.h.b16 %v753
        %v893 = vunpack.c.l.b16 %v754
        %v894 = vunpack.c.h.b16 %v754
        %v895 = vunpack.c.l.b16 %v755
        %v896 = vunpack.c.h.b16 %v755
        %v897 = vunpack.c.l.b16 %v756
        %v898 = vunpack.c.h.b16 %v756
        %v899 = vunpack.c.l.b16 %v757
        %v900 = vunpack.c.h.b16 %v757
        %v901 = vunpack.c.l.b16 %v758
        %v902 = vunpack.c.h.b16 %v758
        %v903 = vunpack.c.l.b16 %v759
        %v904 = vunpack.c.h.b16 %v759
        %v905 = vunpack.c.l.b16 %v760
        %v906 = vunpack.c.h.b16 %v760
        %v907 = vunpack.c.l.b16 %v761
        %v908 = vunpack.c.h.b16 %v761
        %v909 = vunpack.c.l.b16 %v762
        %v910 = vunpack.c.h.b16 %v762
        %v911 = vunpack.c.l.b16 %v763
        %v912 = vunpack.c.h.b16 %v763
        %v913 = vunpack.c.l.b16 %v764
        %v914 = vunpack.c.h.b16 %v764
        %v915 = vunpack.c.l.b16 %v765
        %v916 = vunpack.c.h.b16 %v765
        %v917 = vunpack.c.l.b16 %v766
        %v918 = vunpack.c.h.b16 %v766
        %v919 = vunpack.c.l.b16 %v767
        %v920 = vunpack.c.h.b16 %v767
        %v921 = vunpack.c.l.b16 %v768
        %v922 = vunpack.c.h.b16 %v768
        %v923 = vunpack.c.l.b16 %v769
        %v924 = vunpack.c.h.b16 %v769
        %v925 = vunpack.c.l.b16 %v770
        %v926 = vunpack.c.h.b16 %v770
        %v927 = vunpack.c.l.b16 %v771
        %v928 = vunpack.c.h.b16 %v771
        %v929 = vunpack.c.l.b16 %v772
        %v930 = vunpack.c.h.b16 %v772
        %v931 = vunpack.c.l.b16 %v773
        %v932 = vunpack.c.h.b16 %v773
        %v933 = vunpack.c.l.b16 %v774
        %v934 = vunpack.c.h.b16 %v774
        %v935 = vunpack.c.l.b16 %v775
        %v936 = vunpack.c.h.b16 %v775
        %v937 = vunpack.c.l.b16 %v776
        %v938 = vunpack.c.h.b16 %v776
        %v939 = vunpack.c.l.b16 %v777
        %v940 = vunpack.c.h.b16 %v777
        %v941 = vunpack.c.l.b16 %v778
        %v942 = vunpack.c.h.b16 %v778
        %v943 = vunpack.c.l.b16 %v779
        %v944 = vunpack.c.h.b16 %v779
        %v945 = vunpack.c.l.b16 %v780
        %v946 = vunpack.c.h.b16 %v780
        %v947 = vunpack.c.l.b16 %v781
        %v948 = vunpack.c.h.b16 %v781
        %v949 = vunpack.c.l.b16 %v782
        %v950 = vunpack.c.h.b16 %v782
        %v951 = vunpack.c.l.b16 %v783
        %v952 = vunpack.c.h.b16 %v783
        %v953 = vunpack.c.l.b16 %v784
        %v954 = vunpack.c.h.b16 %v784
        %v955 = vunpack.c.l.b16 %v785
        %v956 = vunpack.c.h.b16 %v785
        %v957 = vunpack.c.l.b16 %v786
        %v958 = vunpack.c.h.b16 %v786
        %v959 = vunpack.c.l.b16 %v787
        %v960 = vunpack.c.h.b16 %v787
        %v961 = vunpack.c.l.b16 %v788
        %v962 = vunpack.c.h.b16 %v788
        %v963 = vunpack.c.l.b16 %v789
        %v964 = vunpack.c.h.b16 %v789
        %v965 = vunpack.c.l.b16 %v790
        %v966 = vunpack.c.h.b16 %v790
        %v967 = vunpack.c.l.b16 %v791
        %v968 = vunpack.c.h.b16 %v791
        %v969 = vunpack.c.l.b16 %v792
        %v970 = vunpack.c.h.b16 %v792
        %v971 = vunpack.c.l.b16 %v793
        %v972 = vunpack.c.h.b16 %v793
        %v973 = vunpack.c.l.b16 %v794
        %v974 = vunpack.c.h.b16 %v794
        %v975 = vunpack.c.l.b16 %v795
        %v976 = vunpack.c.h.b16 %v795
        %v977 = vunpack.c.l.b16 %v796
        %v978 = vunpack.c.h.b16 %v796
        %v979 = vunpack.c.l.b16 %v797
        %v980 = vunpack.c.h.b16 %v797
        %v981 = vunpack.c.l.b16 %v798
        %v982 = vunpack.c.h.b16 %v798
        %v983 = vunpack.c.l.b16 %v799
        %v984 = vunpack.c.h.b16 %v799
        %v985 = vunpack.c.l.b16 %v800
        %v986 = vunpack.c.h.b16 %v800
        %v987 = vunpack.c.l.b16 %v801
        %v988 = vunpack.c.h.b16 %v801
        %v989 = vunpack.c.l.b16 %v802
        %v990 = vunpack.c.h.b16 %v802
        %v991 = vunpack.c.l.b16 %v803
        %v992 = vunpack.c.h.b16 %v803
        %v993 = vunpack.c.l.b16 %v804
        %v994 = vunpack.c.h.b16 %v804
        %v995 = vunpack.c.l.b16 %v805
        %v996 = vunpack.c.h.b16 %v805
        %v997 = vunpack.c.l.b16 %v806
        %v998 = vunpack.c.h.b16 %v806
        %v999 = vpack.c.b16 %v879, %v871
        %v1000 = vpack.c.b16 %v880, %v872
        %v1001 = vpack.c.b16 %v881, %v873
        %v1002 = vpack.c.b16 %v882, %v874
        %v1003 = vpack.c.b16 %v883, %v875
        %v1004 = vpack.c.b16 %v884, %v876
        %v1005 = vpack.c.b16 %v885, %v877
        %v1006 = vpack.c.b16 %v886, %v878
        %v1007 = vpack.c.b16 %v895, %v887
        %v1008 = vpack.c.b16 %v896, %v888
        %v1009 = vpack.c.b16 %v897, %v889
        %v1010 = vpack.c.b16 %v898, %v890
        %v1011 = vpack.c.b16 %v899, %v891
        %v1012 = vpack.c.b16 %v900, %v892
        %v1013 = vpack.c.b16 %v901, %v893
        %v1014 = vpack.c.b16 %v902, %v894
        %v1015 = vpack.c.b16 %v911, %v903
        %v1016 = vpack.c.b16 %v912, %v904
        %v1017 = vpack.c.b16 %v913, %v905
        %v1018 = vpack.c.b16 %v914, %v906
        %v1019 = vpack.c.b16 %v915, %v907
        %v1020 = vpack.c.b16 %v916, %v908
        %v1021 = vpack.c.b16 %v917, %v909
        %v1022 = vpack.c.b16 %v918, %v910
        %v1023 = vpack.c.b16 %v927, %v919
        %v1024 = vpack.c.b16 %v928, %v920
        %v1025 = vpack.c.b16 %v929, %v921
        %v1026 = vpack.c.b16 %v930, %v922
        %v1027 = vpack.c.b16 %v931, %v923
        %v1028 = vpack.c.b16 %v932, %v924
        %v1029 = vpack.c.b16 %v933, %v925
        %v1030 = vpack.c.b16 %v934, %v926
        %v1031 = vpack.c.b16 %v943, %v935
        %v1032 = vpack.c.b16 %v944, %v936
        %v1033 = vpack.c.b16 %v945, %v937
        %v1034 = vpack.c.b16 %v946, %v938
        %v1035 = vpack.c.b16 %v947, %v939
        %v1036 = vpack.c.b16 %v948, %v940
        %v1037 = vpack.c.b16 %v949, %v941
        %v1038 = vpack.c.b16 %v950, %v942
        %v1039 = vpack.c.b16 %v959, %v951
        %v1040 = vpack.c.b16 %v960, %v952
        %v1041 = vpack.c.b16 %v961, %v953
        %v1042 = vpack.c.b16 %v962, %v954
        %v1043 = vpack.c.b16 %v963, %v955
        %v1044 = vpack.c.b16 %v964, %v956
        %v1045 = vpack.c.b16 %v965, %v957
        %v1046 = vpack.c.b16 %v966, %v958
        %v1047 = vpack.c.b16 %v975, %v967
        %v1048 = vpack.c.b16 %v976, %v968
        %v1049 = vpack.c.b16 %v977, %v969
        %v1050 = vpack.c.b16 %v978, %v970
        %v1051 = vpack.c.b16 %v979, %v971
        %v1052 = vpack.c.b16 %v980, %v972
        %v1053 = vpack.c.b16 %v981, %v973
        %v1054 = vpack.c.b16 %v982, %v974
        %v1055 = vpack.c.b16 %v991, %v983
        %v1056 = vpack.c.b16 %v992, %v984
        %v1057 = vpack.c.b16 %v993, %v985
        %v1058 = vpack.c.b16 %v994, %v986
        %v1059 = vpack.c.b16 %v995, %v987
        %v1060 = vpack.c.b16 %v996, %v988
        %v1061 = vpack.c.b16 %v997, %v989
        %v1062 = vpack.c.b16 %v998, %v990
        %1127 = vmatprep.subr.bf16.mxu0 %v1000
        %1128 = vmatpush1.bf16.msra.mxu0 %v999
        %1129 = vmatprep.subr.bf16.mxu0 %v1008
        %1130 = vmatpush1.bf16.msra.mxu0 %v1007
        %1131 = vmatprep.subr.bf16.mxu0 %v1016
        %1132 = vmatpush1.bf16.msra.mxu0 %v1015
        %1133 = vmatprep.subr.bf16.mxu0 %v1024
        %1134 = vmatpush1.bf16.msra.mxu0 %v1023
        %1135 = vmatprep.subr.bf16.mxu0 %v1032
        %1136 = vmatpush1.bf16.msra.mxu0 %v1031
        %1137 = vmatprep.subr.bf16.mxu0 %v1040
        %1138 = vmatpush1.bf16.msra.mxu0 %v1039
        %1139 = vmatprep.subr.bf16.mxu0 %v1048
        %1140 = vmatpush1.bf16.msra.mxu0 %v1047
        %1141 = vmatprep.subr.bf16.mxu0 %v1056
        %1142 = vmatpush1.bf16.msra.mxu0 %v1055
        %1143 = vmatprep.subr.bf16.mxu0 0
        %1144 = vmatpush1.bf16.msra.mxu0 0
        %1145 = vmatprep.subr.bf16.mxu0 0
        %1146 = vmatpush1.bf16.msra.mxu0 0
        %1147 = vmatprep.subr.bf16.mxu0 0
        %1148 = vmatpush1.bf16.msra.mxu0 0
        %1149 = vmatprep.subr.bf16.mxu0 0
        %1150 = vmatpush1.bf16.msra.mxu0 0
        %1151 = vmatprep.subr.bf16.mxu0 0
        %1152 = vmatpush1.bf16.msra.mxu0 0
        %1153 = vmatprep.subr.bf16.mxu0 0
        %1154 = vmatpush1.bf16.msra.mxu0 0
        %1155 = vmatprep.subr.bf16.mxu0 0
        %1156 = vmatpush1.bf16.msra.mxu0 0
        %1157 = vmatprep.subr.bf16.mxu0 0
        %1158 = vmatpush1.bf16.msra.mxu0 0
        %1159 = vmatprep.mubr.bf16.mxu0 0
        %1160 = vmatmul.mubr.bf16.gmra.mrb[0].mxu0 %v249
        %v1161 = vpop.f32.mrb[0].mxu0
        %v1162 = vadd.f32 0.0, %v1161
        %v1163 = vpop.f32.mrb[0].mxu0
        %v1164 = vadd.f32 0.0, %v1163
        %v1165 = vpop.f32.mrb[0].mxu0
        %v1166 = vadd.f32 0.0, %v1165
        %v1167 = vpop.f32.mrb[0].mxu0
        %v1168 = vadd.f32 0.0, %v1167
        %1169 = vdwg.mxu0
        %1170 = vmatprep.subr.bf16.mxu0 %v1002
        %1171 = vmatpush1.bf16.msra.mxu0 %v1001
        %1172 = vmatprep.subr.bf16.mxu0 %v1010
        %1173 = vmatpush1.bf16.msra.mxu0 %v1009
        %1174 = vmatprep.subr.bf16.mxu0 %v1018
        %1175 = vmatpush1.bf16.msra.mxu0 %v1017
        %1176 = vmatprep.subr.bf16.mxu0 %v1026
        %1177 = vmatpush1.bf16.msra.mxu0 %v1025
        %1178 = vmatprep.subr.bf16.mxu0 %v1034
        %1179 = vmatpush1.bf16.msra.mxu0 %v1033
        %1180 = vmatprep.subr.bf16.mxu0 %v1042
        %1181 = vmatpush1.bf16.msra.mxu0 %v1041
        %1182 = vmatprep.subr.bf16.mxu0 %v1050
        %1183 = vmatpush1.bf16.msra.mxu0 %v1049
        %1184 = vmatprep.subr.bf16.mxu0 %v1058
        %1185 = vmatpush1.bf16.msra.mxu0 %v1057
        %1186 = vmatprep.subr.bf16.mxu0 0
        %1187 = vmatpush1.bf16.msra.mxu0 0
        %1188 = vmatprep.subr.bf16.mxu0 0
        %1189 = vmatpush1.bf16.msra.mxu0 0
        %1190 = vmatprep.subr.bf16.mxu0 0
        %1191 = vmatpush1.bf16.msra.mxu0 0
        %1192 = vmatprep.subr.bf16.mxu0 0
        %1193 = vmatpush1.bf16.msra.mxu0 0
        %1194 = vmatprep.subr.bf16.mxu0 0
        %1195 = vmatpush1.bf16.msra.mxu0 0
        %1196 = vmatprep.subr.bf16.mxu0 0
        %1197 = vmatpush1.bf16.msra.mxu0 0
        %1198 = vmatprep.subr.bf16.mxu0 0
        %1199 = vmatpush1.bf16.msra.mxu0 0
        %1200 = vmatprep.subr.bf16.mxu0 0
        %1201 = vmatpush1.bf16.msra.mxu0 0
        %1202 = vmatprep.mubr.bf16.mxu0 0
        %1203 = vmatmul.mubr.bf16.gmra.mrb[0].mxu0 %v249
        %v1204 = vpop.f32.mrb[0].mxu0
        %v1205 = vadd.f32 0.0, %v1204
        %v1206 = vpop.f32.mrb[0].mxu0
        %v1207 = vadd.f32 0.0, %v1206
        %v1208 = vpop.f32.mrb[0].mxu0
        %v1209 = vadd.f32 0.0, %v1208
        %v1210 = vpop.f32.mrb[0].mxu0
        %v1211 = vadd.f32 0.0, %v1210
        %1212 = vdwg.mxu0
        %1213 = vmatprep.subr.bf16.mxu0 %v1004
        %1214 = vmatpush1.bf16.msra.mxu0 %v1003
        %1215 = vmatprep.subr.bf16.mxu0 %v1012
        %1216 = vmatpush1.bf16.msra.mxu0 %v1011
        %1217 = vmatprep.subr.bf16.mxu0 %v1020
        %1218 = vmatpush1.bf16.msra.mxu0 %v1019
        %1219 = vmatprep.subr.bf16.mxu0 %v1028
        %1220 = vmatpush1.bf16.msra.mxu0 %v1027
        %1221 = vmatprep.subr.bf16.mxu0 %v1036
        %1222 = vmatpush1.bf16.msra.mxu0 %v1035
        %1223 = vmatprep.subr.bf16.mxu0 %v1044
        %1224 = vmatpush1.bf16.msra.mxu0 %v1043
        %1225 = vmatprep.subr.bf16.mxu0 %v1052
        %1226 = vmatpush1.bf16.msra.mxu0 %v1051
        %1227 = vmatprep.subr.bf16.mxu0 %v1060
        %1228 = vmatpush1.bf16.msra.mxu0 %v1059
        %1229 = vmatprep.subr.bf16.mxu0 0
        %1230 = vmatpush1.bf16.msra.mxu0 0
        %1231 = vmatprep.subr.bf16.mxu0 0
        %1232 = vmatpush1.bf16.msra.mxu0 0
        %1233 = vmatprep.subr.bf16.mxu0 0
        %1234 = vmatpush1.bf16.msra.mxu0 0
        %1235 = vmatprep.subr.bf16.mxu0 0
        %1236 = vmatpush1.bf16.msra.mxu0 0
        %1237 = vmatprep.subr.bf16.mxu0 0
        %1238 = vmatpush1.bf16.msra.mxu0 0
        %1239 = vmatprep.subr.bf16.mxu0 0
        %1240 = vmatpush1.bf16.msra.mxu0 0
        %1241 = vmatprep.subr.bf16.mxu0 0
        %1242 = vmatpush1.bf16.msra.mxu0 0
        %1243 = vmatprep.subr.bf16.mxu0 0
        %1244 = vmatpush1.bf16.msra.mxu0 0
        %1245 = vmatprep.mubr.bf16.mxu0 0
        %1246 = vmatmul.mubr.bf16.gmra.mrb[0].mxu0 %v249
        %v1247 = vpop.f32.mrb[0].mxu0
        %v1248 = vadd.f32 0.0, %v1247
        %v1249 = vpop.f32.mrb[0].mxu0
        %v1250 = vadd.f32 0.0, %v1249
        %v1251 = vpop.f32.mrb[0].mxu0
        %v1252 = vadd.f32 0.0, %v1251
        %v1253 = vpop.f32.mrb[0].mxu0
        %v1254 = vadd.f32 0.0, %v1253
        %1255 = vdwg.mxu0
        %1256 = vmatprep.subr.bf16.mxu0 %v1006
        %1257 = vmatpush1.bf16.msra.mxu0 %v1005
        %1258 = vmatprep.subr.bf16.mxu0 %v1014
        %1259 = vmatpush1.bf16.msra.mxu0 %v1013
        %1260 = vmatprep.subr.bf16.mxu0 %v1022
        %1261 = vmatpush1.bf16.msra.mxu0 %v1021
        %1262 = vmatprep.subr.bf16.mxu0 %v1030
        %1263 = vmatpush1.bf16.msra.mxu0 %v1029
        %1264 = vmatprep.subr.bf16.mxu0 %v1038
        %1265 = vmatpush1.bf16.msra.mxu0 %v1037
        %1266 = vmatprep.subr.bf16.mxu0 %v1046
        %1267 = vmatpush1.bf16.msra.mxu0 %v1045
        %1268 = vmatprep.subr.bf16.mxu0 %v1054
        %1269 = vmatpush1.bf16.msra.mxu0 %v1053
        %1270 = vmatprep.subr.bf16.mxu0 %v1062
        %1271 = vmatpush1.bf16.msra.mxu0 %v1061
        %1272 = vmatprep.subr.bf16.mxu0 0
        %1273 = vmatpush1.bf16.msra.mxu0 0
        %1274 = vmatprep.subr.bf16.mxu0 0
        %1275 = vmatpush1.bf16.msra.mxu0 0
        %1276 = vmatprep.subr.bf16.mxu0 0
        %1277 = vmatpush1.bf16.msra.mxu0 0
        %1278 = vmatprep.subr.bf16.mxu0 0
        %1279 = vmatpush1.bf16.msra.mxu0 0
        %1280 = vmatprep.subr.bf16.mxu0 0
        %1281 = vmatpush1.bf16.msra.mxu0 0
        %1282 = vmatprep.subr.bf16.mxu0 0
        %1283 = vmatpush1.bf16.msra.mxu0 0
        %1284 = vmatprep.subr.bf16.mxu0 0
        %1285 = vmatpush1.bf16.msra.mxu0 0
        %1286 = vmatprep.subr.bf16.mxu0 0
        %1287 = vmatpush1.bf16.msra.mxu0 0
        %1288 = vmatprep.mubr.bf16.mxu0 0
        %1289 = vmatmul.mubr.bf16.gmra.mrb[0].mxu0 %v249
        %v1290 = vpop.f32.mrb[0].mxu0
        %v1291 = vadd.f32 0.0, %v1290
        %v1292 = vpop.f32.mrb[0].mxu0
        %v1293 = vadd.f32 0.0, %v1292
        %v1294 = vpop.f32.mrb[0].mxu0
        %v1295 = vadd.f32 0.0, %v1294
        %v1296 = vpop.f32.mrb[0].mxu0
        %v1297 = vadd.f32 0.0, %v1296
        %1298 = vdwg.mxu0
        %v1299 = vmax.f32 %v606, %v1162
        %v1300 = vmax.f32 %v608, %v1164
        %v1301 = vmax.f32 %v649, %v1205
        %v1302 = vmax.f32 %v651, %v1207
        %v1303 = vmax.f32 %v692, %v1248
        %v1304 = vmax.f32 %v694, %v1250
        %v1305 = vmax.f32 %v735, %v1291
        %v1306 = vmax.f32 %v737, %v1293
        %v1307 = vmax.f32 %v610, %v1166
        %v1308 = vmax.f32 %v612, %v1168
        %v1309 = vmax.f32 %v653, %v1209
        %v1310 = vmax.f32 %v655, %v1211
        %v1311 = vmax.f32 %v696, %v1252
        %v1312 = vmax.f32 %v698, %v1254
        %v1313 = vmax.f32 %v739, %v1295
        %v1314 = vmax.f32 %v741, %v1297
        %v1315 = vld [vmem:[%s156 + $0x40] sm:$0xff]
        %v1316 = vld [vmem:[%s156 + $0x48] sm:$0xff]
        %v1317 = vld [vmem:[%s156 + $0x50] sm:$0xff]
        %v1318 = vld [vmem:[%s156 + $0x58] sm:$0xff]
        %v1319 = vld [vmem:[%s156 + $0xa0] sm:$0xff]
        %v1320 = vld [vmem:[%s156 + $0xa8] sm:$0xff]
        %v1321 = vld [vmem:[%s156 + $0xb0] sm:$0xff]
        %v1322 = vld [vmem:[%s156 + $0xb8] sm:$0xff]
        %v1323 = vld [vmem:[%s156 + $0x100] sm:$0xff]
        %v1324 = vld [vmem:[%s156 + $0x108] sm:$0xff]
        %v1325 = vld [vmem:[%s156 + $0x110] sm:$0xff]
        %v1326 = vld [vmem:[%s156 + $0x118] sm:$0xff]
        %v1327 = vld [vmem:[%s156 + $0x160] sm:$0xff]
        %v1328 = vld [vmem:[%s156 + $0x168] sm:$0xff]
        %v1329 = vld [vmem:[%s156 + $0x170] sm:$0xff]
        %v1330 = vld [vmem:[%s156 + $0x178] sm:$0xff]
        %v1331 = vld [vmem:[%s156 + $0x1c0] sm:$0xff]
        %v1332 = vld [vmem:[%s156 + $0x1c8] sm:$0xff]
        %v1333 = vld [vmem:[%s156 + $0x1d0] sm:$0xff]
        %v1334 = vld [vmem:[%s156 + $0x1d8] sm:$0xff]
        %v1335 = vld [vmem:[%s156 + $0x220] sm:$0xff]
        %v1336 = vld [vmem:[%s156 + $0x228] sm:$0xff]
        %v1337 = vld [vmem:[%s156 + $0x230] sm:$0xff]
        %v1338 = vld [vmem:[%s156 + $0x238] sm:$0xff]
        %v1339 = vld [vmem:[%s156 + $0x280] sm:$0xff]
        %v1340 = vld [vmem:[%s156 + $0x288] sm:$0xff]
        %v1341 = vld [vmem:[%s156 + $0x290] sm:$0xff]
        %v1342 = vld [vmem:[%s156 + $0x298] sm:$0xff]
        %v1343 = vld [vmem:[%s156 + $0x2e0] sm:$0xff]
        %v1344 = vld [vmem:[%s156 + $0x2e8] sm:$0xff]
        %v1345 = vld [vmem:[%s156 + $0x2f0] sm:$0xff]
        %v1346 = vld [vmem:[%s156 + $0x2f8] sm:$0xff]
        %v1347 = vld [vmem:[%s156 + $0x340] sm:$0xff]
        %v1348 = vld [vmem:[%s156 + $0x348] sm:$0xff]
        %v1349 = vld [vmem:[%s156 + $0x350] sm:$0xff]
        %v1350 = vld [vmem:[%s156 + $0x358] sm:$0xff]
        %v1351 = vld [vmem:[%s156 + $0x3a0] sm:$0xff]
        %v1352 = vld [vmem:[%s156 + $0x3a8] sm:$0xff]
        %v1353 = vld [vmem:[%s156 + $0x3b0] sm:$0xff]
        %v1354 = vld [vmem:[%s156 + $0x3b8] sm:$0xff]
        %v1355 = vld [vmem:[%s156 + $0x400] sm:$0xff]
        %v1356 = vld [vmem:[%s156 + $0x408] sm:$0xff]
        %v1357 = vld [vmem:[%s156 + $0x410] sm:$0xff]
        %v1358 = vld [vmem:[%s156 + $0x418] sm:$0xff]
        %v1359 = vld [vmem:[%s156 + $0x460] sm:$0xff]
        %v1360 = vld [vmem:[%s156 + $0x468] sm:$0xff]
        %v1361 = vld [vmem:[%s156 + $0x470] sm:$0xff]
        %v1362 = vld [vmem:[%s156 + $0x478] sm:$0xff]
        %v1363 = vld [vmem:[%s156 + $0x4c0] sm:$0xff]
        %v1364 = vld [vmem:[%s156 + $0x4c8] sm:$0xff]
        %v1365 = vld [vmem:[%s156 + $0x4d0] sm:$0xff]
        %v1366 = vld [vmem:[%s156 + $0x4d8] sm:$0xff]
        %v1367 = vld [vmem:[%s156 + $0x520] sm:$0xff]
        %v1368 = vld [vmem:[%s156 + $0x528] sm:$0xff]
        %v1369 = vld [vmem:[%s156 + $0x530] sm:$0xff]
        %v1370 = vld [vmem:[%s156 + $0x538] sm:$0xff]
        %v1371 = vld [vmem:[%s156 + $0x580] sm:$0xff]
        %v1372 = vld [vmem:[%s156 + $0x588] sm:$0xff]
        %v1373 = vld [vmem:[%s156 + $0x590] sm:$0xff]
        %v1374 = vld [vmem:[%s156 + $0x598] sm:$0xff]
        %v1375 = vld [vmem:[%s156 + $0x5e0] sm:$0xff]
        %v1376 = vld [vmem:[%s156 + $0x5e8] sm:$0xff]
        %v1377 = vld [vmem:[%s156 + $0x5f0] sm:$0xff]
        %v1378 = vld [vmem:[%s156 + $0x5f8] sm:$0xff]
        %v1443 = vunpack.c.l.b16 %v1315
        %v1444 = vunpack.c.h.b16 %v1315
        %v1445 = vunpack.c.l.b16 %v1316
        %v1446 = vunpack.c.h.b16 %v1316
        %v1447 = vunpack.c.l.b16 %v1317
        %v1448 = vunpack.c.h.b16 %v1317
        %v1449 = vunpack.c.l.b16 %v1318
        %v1450 = vunpack.c.h.b16 %v1318
        %v1451 = vunpack.c.l.b16 %v1319
        %v1452 = vunpack.c.h.b16 %v1319
        %v1453 = vunpack.c.l.b16 %v1320
        %v1454 = vunpack.c.h.b16 %v1320
        %v1455 = vunpack.c.l.b16 %v1321
        %v1456 = vunpack.c.h.b16 %v1321
        %v1457 = vunpack.c.l.b16 %v1322
        %v1458 = vunpack.c.h.b16 %v1322
        %v1459 = vunpack.c.l.b16 %v1323
        %v1460 = vunpack.c.h.b16 %v1323
        %v1461 = vunpack.c.l.b16 %v1324
        %v1462 = vunpack.c.h.b16 %v1324
        %v1463 = vunpack.c.l.b16 %v1325
        %v1464 = vunpack.c.h.b16 %v1325
        %v1465 = vunpack.c.l.b16 %v1326
        %v1466 = vunpack.c.h.b16 %v1326
        %v1467 = vunpack.c.l.b16 %v1327
        %v1468 = vunpack.c.h.b16 %v1327
        %v1469 = vunpack.c.l.b16 %v1328
        %v1470 = vunpack.c.h.b16 %v1328
        %v1471 = vunpack.c.l.b16 %v1329
        %v1472 = vunpack.c.h.b16 %v1329
        %v1473 = vunpack.c.l.b16 %v1330
        %v1474 = vunpack.c.h.b16 %v1330
        %v1475 = vunpack.c.l.b16 %v1331
        %v1476 = vunpack.c.h.b16 %v1331
        %v1477 = vunpack.c.l.b16 %v1332
        %v1478 = vunpack.c.h.b16 %v1332
        %v1479 = vunpack.c.l.b16 %v1333
        %v1480 = vunpack.c.h.b16 %v1333
        %v1481 = vunpack.c.l.b16 %v1334
        %v1482 = vunpack.c.h.b16 %v1334
        %v1483 = vunpack.c.l.b16 %v1335
        %v1484 = vunpack.c.h.b16 %v1335
        %v1485 = vunpack.c.l.b16 %v1336
        %v1486 = vunpack.c.h.b16 %v1336
        %v1487 = vunpack.c.l.b16 %v1337
        %v1488 = vunpack.c.h.b16 %v1337
        %v1489 = vunpack.c.l.b16 %v1338
        %v1490 = vunpack.c.h.b16 %v1338
        %v1491 = vunpack.c.l.b16 %v1339
        %v1492 = vunpack.c.h.b16 %v1339
        %v1493 = vunpack.c.l.b16 %v1340
        %v1494 = vunpack.c.h.b16 %v1340
        %v1495 = vunpack.c.l.b16 %v1341
        %v1496 = vunpack.c.h.b16 %v1341
        %v1497 = vunpack.c.l.b16 %v1342
        %v1498 = vunpack.c.h.b16 %v1342
        %v1499 = vunpack.c.l.b16 %v1343
        %v1500 = vunpack.c.h.b16 %v1343
        %v1501 = vunpack.c.l.b16 %v1344
        %v1502 = vunpack.c.h.b16 %v1344
        %v1503 = vunpack.c.l.b16 %v1345
        %v1504 = vunpack.c.h.b16 %v1345
        %v1505 = vunpack.c.l.b16 %v1346
        %v1506 = vunpack.c.h.b16 %v1346
        %v1507 = vunpack.c.l.b16 %v1347
        %v1508 = vunpack.c.h.b16 %v1347
        %v1509 = vunpack.c.l.b16 %v1348
        %v1510 = vunpack.c.h.b16 %v1348
        %v1511 = vunpack.c.l.b16 %v1349
        %v1512 = vunpack.c.h.b16 %v1349
        %v1513 = vunpack.c.l.b16 %v1350
        %v1514 = vunpack.c.h.b16 %v1350
        %v1515 = vunpack.c.l.b16 %v1351
        %v1516 = vunpack.c.h.b16 %v1351
        %v1517 = vunpack.c.l.b16 %v1352
        %v1518 = vunpack.c.h.b16 %v1352
        %v1519 = vunpack.c.l.b16 %v1353
        %v1520 = vunpack.c.h.b16 %v1353
        %v1521 = vunpack.c.l.b16 %v1354
        %v1522 = vunpack.c.h.b16 %v1354
        %v1523 = vunpack.c.l.b16 %v1355
        %v1524 = vunpack.c.h.b16 %v1355
        %v1525 = vunpack.c.l.b16 %v1356
        %v1526 = vunpack.c.h.b16 %v1356
        %v1527 = vunpack.c.l.b16 %v1357
        %v1528 = vunpack.c.h.b16 %v1357
        %v1529 = vunpack.c.l.b16 %v1358
        %v1530 = vunpack.c.h.b16 %v1358
        %v1531 = vunpack.c.l.b16 %v1359
        %v1532 = vunpack.c.h.b16 %v1359
        %v1533 = vunpack.c.l.b16 %v1360
        %v1534 = vunpack.c.h.b16 %v1360
        %v1535 = vunpack.c.l.b16 %v1361
        %v1536 = vunpack.c.h.b16 %v1361
        %v1537 = vunpack.c.l.b16 %v1362
        %v1538 = vunpack.c.h.b16 %v1362
        %v1539 = vunpack.c.l.b16 %v1363
        %v1540 = vunpack.c.h.b16 %v1363
        %v1541 = vunpack.c.l.b16 %v1364
        %v1542 = vunpack.c.h.b16 %v1364
        %v1543 = vunpack.c.l.b16 %v1365
        %v1544 = vunpack.c.h.b16 %v1365
        %v1545 = vunpack.c.l.b16 %v1366
        %v1546 = vunpack.c.h.b16 %v1366
        %v1547 = vunpack.c.l.b16 %v1367
        %v1548 = vunpack.c.h.b16 %v1367
        %v1549 = vunpack.c.l.b16 %v1368
        %v1550 = vunpack.c.h.b16 %v1368
        %v1551 = vunpack.c.l.b16 %v1369
        %v1552 = vunpack.c.h.b16 %v1369
        %v1553 = vunpack.c.l.b16 %v1370
        %v1554 = vunpack.c.h.b16 %v1370
        %v1555 = vunpack.c.l.b16 %v1371
        %v1556 = vunpack.c.h.b16 %v1371
        %v1557 = vunpack.c.l.b16 %v1372
        %v1558 = vunpack.c.h.b16 %v1372
        %v1559 = vunpack.c.l.b16 %v1373
        %v1560 = vunpack.c.h.b16 %v1373
        %v1561 = vunpack.c.l.b16 %v1374
        %v1562 = vunpack.c.h.b16 %v1374
        %v1563 = vunpack.c.l.b16 %v1375
        %v1564 = vunpack.c.h.b16 %v1375
        %v1565 = vunpack.c.l.b16 %v1376
        %v1566 = vunpack.c.h.b16 %v1376
        %v1567 = vunpack.c.l.b16 %v1377
        %v1568 = vunpack.c.h.b16 %v1377
        %v1569 = vunpack.c.l.b16 %v1378
        %v1570 = vunpack.c.h.b16 %v1378
        %v1571 = vpack.c.b16 %v1451, %v1443
        %v1572 = vpack.c.b16 %v1452, %v1444
        %v1573 = vpack.c.b16 %v1453, %v1445
        %v1574 = vpack.c.b16 %v1454, %v1446
        %v1575 = vpack.c.b16 %v1455, %v1447
        %v1576 = vpack.c.b16 %v1456, %v1448
        %v1577 = vpack.c.b16 %v1457, %v1449
        %v1578 = vpack.c.b16 %v1458, %v1450
        %v1579 = vpack.c.b16 %v1467, %v1459
        %v1580 = vpack.c.b16 %v1468, %v1460
        %v1581 = vpack.c.b16 %v1469, %v1461
        %v1582 = vpack.c.b16 %v1470, %v1462
        %v1583 = vpack.c.b16 %v1471, %v1463
        %v1584 = vpack.c.b16 %v1472, %v1464
        %v1585 = vpack.c.b16 %v1473, %v1465
        %v1586 = vpack.c.b16 %v1474, %v1466
        %v1587 = vpack.c.b16 %v1483, %v1475
        %v1588 = vpack.c.b16 %v1484, %v1476
        %v1589 = vpack.c.b16 %v1485, %v1477
        %v1590 = vpack.c.b16 %v1486, %v1478
        %v1591 = vpack.c.b16 %v1487, %v1479
        %v1592 = vpack.c.b16 %v1488, %v1480
        %v1593 = vpack.c.b16 %v1489, %v1481
        %v1594 = vpack.c.b16 %v1490, %v1482
        %v1595 = vpack.c.b16 %v1499, %v1491
        %v1596 = vpack.c.b16 %v1500, %v1492
        %v1597 = vpack.c.b16 %v1501, %v1493
        %v1598 = vpack.c.b16 %v1502, %v1494
        %v1599 = vpack.c.b16 %v1503, %v1495
        %v1600 = vpack.c.b16 %v1504, %v1496
        %v1601 = vpack.c.b16 %v1505, %v1497
        %v1602 = vpack.c.b16 %v1506, %v1498
        %v1603 = vpack.c.b16 %v1515, %v1507
        %v1604 = vpack.c.b16 %v1516, %v1508
        %v1605 = vpack.c.b16 %v1517, %v1509
        %v1606 = vpack.c.b16 %v1518, %v1510
        %v1607 = vpack.c.b16 %v1519, %v1511
        %v1608 = vpack.c.b16 %v1520, %v1512
        %v1609 = vpack.c.b16 %v1521, %v1513
        %v1610 = vpack.c.b16 %v1522, %v1514
        %v1611 = vpack.c.b16 %v1531, %v1523
        %v1612 = vpack.c.b16 %v1532, %v1524
        %v1613 = vpack.c.b16 %v1533, %v1525
        %v1614 = vpack.c.b16 %v1534, %v1526
        %v1615 = vpack.c.b16 %v1535, %v1527
        %v1616 = vpack.c.b16 %v1536, %v1528
        %v1617 = vpack.c.b16 %v1537, %v1529
        %v1618 = vpack.c.b16 %v1538, %v1530
        %v1619 = vpack.c.b16 %v1547, %v1539
        %v1620 = vpack.c.b16 %v1548, %v1540
        %v1621 = vpack.c.b16 %v1549, %v1541
        %v1622 = vpack.c.b16 %v1550, %v1542
        %v1623 = vpack.c.b16 %v1551, %v1543
        %v1624 = vpack.c.b16 %v1552, %v1544
        %v1625 = vpack.c.b16 %v1553, %v1545
        %v1626 = vpack.c.b16 %v1554, %v1546
        %v1627 = vpack.c.b16 %v1563, %v1555
        %v1628 = vpack.c.b16 %v1564, %v1556
        %v1629 = vpack.c.b16 %v1565, %v1557
        %v1630 = vpack.c.b16 %v1566, %v1558
        %v1631 = vpack.c.b16 %v1567, %v1559
        %v1632 = vpack.c.b16 %v1568, %v1560
        %v1633 = vpack.c.b16 %v1569, %v1561
        %v1634 = vpack.c.b16 %v1570, %v1562
        %1699 = vmatprep.subr.bf16.mxu0 %v1572
        %1700 = vmatpush1.bf16.msra.mxu0 %v1571
        %1701 = vmatprep.subr.bf16.mxu0 %v1580
        %1702 = vmatpush1.bf16.msra.mxu0 %v1579
        %1703 = vmatprep.subr.bf16.mxu0 %v1588
        %1704 = vmatpush1.bf16.msra.mxu0 %v1587
        %1705 = vmatprep.subr.bf16.mxu0 %v1596
        %1706 = vmatpush1.bf16.msra.mxu0 %v1595
        %1707 = vmatprep.subr.bf16.mxu0 %v1604
        %1708 = vmatpush1.bf16.msra.mxu0 %v1603
        %1709 = vmatprep.subr.bf16.mxu0 %v1612
        %1710 = vmatpush1.bf16.msra.mxu0 %v1611
        %1711 = vmatprep.subr.bf16.mxu0 %v1620
        %1712 = vmatpush1.bf16.msra.mxu0 %v1619
        %1713 = vmatprep.subr.bf16.mxu0 %v1628
        %1714 = vmatpush1.bf16.msra.mxu0 %v1627
        %1715 = vmatprep.subr.bf16.mxu0 0
        %1716 = vmatpush1.bf16.msra.mxu0 0
        %1717 = vmatprep.subr.bf16.mxu0 0
        %1718 = vmatpush1.bf16.msra.mxu0 0
        %1719 = vmatprep.subr.bf16.mxu0 0
        %1720 = vmatpush1.bf16.msra.mxu0 0
        %1721 = vmatprep.subr.bf16.mxu0 0
        %1722 = vmatpush1.bf16.msra.mxu0 0
        %1723 = vmatprep.subr.bf16.mxu0 0
        %1724 = vmatpush1.bf16.msra.mxu0 0
        %1725 = vmatprep.subr.bf16.mxu0 0
        %1726 = vmatpush1.bf16.msra.mxu0 0
        %1727 = vmatprep.subr.bf16.mxu0 0
        %1728 = vmatpush1.bf16.msra.mxu0 0
        %1729 = vmatprep.subr.bf16.mxu0 0
        %1730 = vmatpush1.bf16.msra.mxu0 0
        %1731 = vmatprep.mubr.bf16.mxu0 0
        %1732 = vmatmul.mubr.bf16.gmra.mrb[0].mxu0 %v249
        %v1733 = vpop.f32.mrb[0].mxu0
        %v1734 = vadd.f32 0.0, %v1733
        %v1735 = vpop.f32.mrb[0].mxu0
        %v1736 = vadd.f32 0.0, %v1735
        %v1737 = vpop.f32.mrb[0].mxu0
        %v1738 = vadd.f32 0.0, %v1737
        %v1739 = vpop.f32.mrb[0].mxu0
        %v1740 = vadd.f32 0.0, %v1739
        %1741 = vdwg.mxu0
        %1742 = vmatprep.subr.bf16.mxu0 %v1574
        %1743 = vmatpush1.bf16.msra.mxu0 %v1573
        %1744 = vmatprep.subr.bf16.mxu0 %v1582
        %1745 = vmatpush1.bf16.msra.mxu0 %v1581
        %1746 = vmatprep.subr.bf16.mxu0 %v1590
        %1747 = vmatpush1.bf16.msra.mxu0 %v1589
        %1748 = vmatprep.subr.bf16.mxu0 %v1598
        %1749 = vmatpush1.bf16.msra.mxu0 %v1597
        %1750 = vmatprep.subr.bf16.mxu0 %v1606
        %1751 = vmatpush1.bf16.msra.mxu0 %v1605
        %1752 = vmatprep.subr.bf16.mxu0 %v1614
        %1753 = vmatpush1.bf16.msra.mxu0 %v1613
        %1754 = vmatprep.subr.bf16.mxu0 %v1622
        %1755 = vmatpush1.bf16.msra.mxu0 %v1621
        %1756 = vmatprep.subr.bf16.mxu0 %v1630
        %1757 = vmatpush1.bf16.msra.mxu0 %v1629
        %1758 = vmatprep.subr.bf16.mxu0 0
        %1759 = vmatpush1.bf16.msra.mxu0 0
        %1760 = vmatprep.subr.bf16.mxu0 0
        %1761 = vmatpush1.bf16.msra.mxu0 0
        %1762 = vmatprep.subr.bf16.mxu0 0
        %1763 = vmatpush1.bf16.msra.mxu0 0
        %1764 = vmatprep.subr.bf16.mxu0 0
        %1765 = vmatpush1.bf16.msra.mxu0 0
        %1766 = vmatprep.subr.bf16.mxu0 0
        %1767 = vmatpush1.bf16.msra.mxu0 0
        %1768 = vmatprep.subr.bf16.mxu0 0
        %1769 = vmatpush1.bf16.msra.mxu0 0
        %1770 = vmatprep.subr.bf16.mxu0 0
        %1771 = vmatpush1.bf16.msra.mxu0 0
        %1772 = vmatprep.subr.bf16.mxu0 0
        %1773 = vmatpush1.bf16.msra.mxu0 0
        %1774 = vmatprep.mubr.bf16.mxu0 0
        %1775 = vmatmul.mubr.bf16.gmra.mrb[0].mxu0 %v249
        %v1776 = vpop.f32.mrb[0].mxu0
        %v1777 = vadd.f32 0.0, %v1776
        %v1778 = vpop.f32.mrb[0].mxu0
        %v1779 = vadd.f32 0.0, %v1778
        %v1780 = vpop.f32.mrb[0].mxu0
        %v1781 = vadd.f32 0.0, %v1780
        %v1782 = vpop.f32.mrb[0].mxu0
        %v1783 = vadd.f32 0.0, %v1782
        %1784 = vdwg.mxu0
        %1785 = vmatprep.subr.bf16.mxu0 %v1576
        %1786 = vmatpush1.bf16.msra.mxu0 %v1575
        %1787 = vmatprep.subr.bf16.mxu0 %v1584
        %1788 = vmatpush1.bf16.msra.mxu0 %v1583
        %1789 = vmatprep.subr.bf16.mxu0 %v1592
        %1790 = vmatpush1.bf16.msra.mxu0 %v1591
        %1791 = vmatprep.subr.bf16.mxu0 %v1600
        %1792 = vmatpush1.bf16.msra.mxu0 %v1599
        %1793 = vmatprep.subr.bf16.mxu0 %v1608
        %1794 = vmatpush1.bf16.msra.mxu0 %v1607
        %1795 = vmatprep.subr.bf16.mxu0 %v1616
        %1796 = vmatpush1.bf16.msra.mxu0 %v1615
        %1797 = vmatprep.subr.bf16.mxu0 %v1624
        %1798 = vmatpush1.bf16.msra.mxu0 %v1623
        %1799 = vmatprep.subr.bf16.mxu0 %v1632
        %1800 = vmatpush1.bf16.msra.mxu0 %v1631
        %1801 = vmatprep.subr.bf16.mxu0 0
        %1802 = vmatpush1.bf16.msra.mxu0 0
        %1803 = vmatprep.subr.bf16.mxu0 0
        %1804 = vmatpush1.bf16.msra.mxu0 0
        %1805 = vmatprep.subr.bf16.mxu0 0
        %1806 = vmatpush1.bf16.msra.mxu0 0
        %1807 = vmatprep.subr.bf16.mxu0 0
        %1808 = vmatpush1.bf16.msra.mxu0 0
        %1809 = vmatprep.subr.bf16.mxu0 0
        %1810 = vmatpush1.bf16.msra.mxu0 0
        %1811 = vmatprep.subr.bf16.mxu0 0
        %1812 = vmatpush1.bf16.msra.mxu0 0
        %1813 = vmatprep.subr.bf16.mxu0 0
        %1814 = vmatpush1.bf16.msra.mxu0 0
        %1815 = vmatprep.subr.bf16.mxu0 0
        %1816 = vmatpush1.bf16.msra.mxu0 0
        %1817 = vmatprep.mubr.bf16.mxu0 0
        %1818 = vmatmul.mubr.bf16.gmra.mrb[0].mxu0 %v249
        %v1819 = vpop.f32.mrb[0].mxu0
        %v1820 = vadd.f32 0.0, %v1819
        %v1821 = vpop.f32.mrb[0].mxu0
        %v1822 = vadd.f32 0.0, %v1821
        %v1823 = vpop.f32.mrb[0].mxu0
        %v1824 = vadd.f32 0.0, %v1823
        %v1825 = vpop.f32.mrb[0].mxu0
        %v1826 = vadd.f32 0.0, %v1825
        %1827 = vdwg.mxu0
        %1828 = vmatprep.subr.bf16.mxu0 %v1578
        %1829 = vmatpush1.bf16.msra.mxu0 %v1577
        %1830 = vmatprep.subr.bf16.mxu0 %v1586
        %1831 = vmatpush1.bf16.msra.mxu0 %v1585
        %1832 = vmatprep.subr.bf16.mxu0 %v1594
        %1833 = vmatpush1.bf16.msra.mxu0 %v1593
        %1834 = vmatprep.subr.bf16.mxu0 %v1602
        %1835 = vmatpush1.bf16.msra.mxu0 %v1601
        %1836 = vmatprep.subr.bf16.mxu0 %v1610
        %1837 = vmatpush1.bf16.msra.mxu0 %v1609
        %1838 = vmatprep.subr.bf16.mxu0 %v1618
        %1839 = vmatpush1.bf16.msra.mxu0 %v1617
        %1840 = vmatprep.subr.bf16.mxu0 %v1626
        %1841 = vmatpush1.bf16.msra.mxu0 %v1625
        %1842 = vmatprep.subr.bf16.mxu0 %v1634
        %1843 = vmatpush1.bf16.msra.mxu0 %v1633
        %1844 = vmatprep.subr.bf16.mxu0 0
        %1845 = vmatpush1.bf16.msra.mxu0 0
        %1846 = vmatprep.subr.bf16.mxu0 0
        %1847 = vmatpush1.bf16.msra.mxu0 0
        %1848 = vmatprep.subr.bf16.mxu0 0
        %1849 = vmatpush1.bf16.msra.mxu0 0
        %1850 = vmatprep.subr.bf16.mxu0 0
        %1851 = vmatpush1.bf16.msra.mxu0 0
        %1852 = vmatprep.subr.bf16.mxu0 0
        %1853 = vmatpush1.bf16.msra.mxu0 0
        %1854 = vmatprep.subr.bf16.mxu0 0
        %1855 = vmatpush1.bf16.msra.mxu0 0
        %1856 = vmatprep.subr.bf16.mxu0 0
        %1857 = vmatpush1.bf16.msra.mxu0 0
        %1858 = vmatprep.subr.bf16.mxu0 0
        %1859 = vmatpush1.bf16.msra.mxu0 0
        %1860 = vmatprep.mubr.bf16.mxu0 0
        %1861 = vmatmul.mubr.bf16.gmra.mrb[0].mxu0 %v249
        %v1862 = vpop.f32.mrb[0].mxu0
        %v1863 = vadd.f32 0.0, %v1862
        %v1864 = vpop.f32.mrb[0].mxu0
        %v1865 = vadd.f32 0.0, %v1864
        %v1866 = vpop.f32.mrb[0].mxu0
        %v1867 = vadd.f32 0.0, %v1866
        %v1868 = vpop.f32.mrb[0].mxu0
        %v1869 = vadd.f32 0.0, %v1868
        %1870 = vdwg.mxu0
        %v1871 = vmax.f32 %v1299, %v1734
        %v1872 = vmax.f32 %v1300, %v1736
        %v1873 = vmax.f32 %v1301, %v1777
        %v1874 = vmax.f32 %v1302, %v1779
        %v1875 = vmax.f32 %v1303, %v1820
        %v1876 = vmax.f32 %v1304, %v1822
        %v1877 = vmax.f32 %v1305, %v1863
        %v1878 = vmax.f32 %v1306, %v1865
        %v1879 = vmax.f32 %v1307, %v1738
        %v1880 = vmax.f32 %v1308, %v1740
        %v1881 = vmax.f32 %v1309, %v1781
        %v1882 = vmax.f32 %v1310, %v1783
        %v1883 = vmax.f32 %v1311, %v1824
        %v1884 = vmax.f32 %v1312, %v1826
        %v1885 = vmax.f32 %v1313, %v1867
        %v1886 = vmax.f32 %v1314, %v1869
        %1887 = vst [vmem:[%s176] sm:$0xff] %v1871
        %1888 = vst [vmem:[%s176 + $0x8] sm:$0xff] %v1872
        %1889 = vst [vmem:[%s176 + $0x10] sm:$0xff] %v1873
        %1890 = vst [vmem:[%s176 + $0x18] sm:$0xff] %v1874
        %1891 = vst [vmem:[%s176 + $0x20] sm:$0xff] %v1875
        %1892 = vst [vmem:[%s176 + $0x28] sm:$0xff] %v1876
        %1893 = vst [vmem:[%s176 + $0x30] sm:$0xff] %v1877
        %1894 = vst [vmem:[%s176 + $0x38] sm:$0xff] %v1878
        %1895 = vst [vmem:[%s176 + $0x40] sm:$0xff] %v1879
        %1896 = vst [vmem:[%s176 + $0x48] sm:$0xff] %v1880
        %1897 = vst [vmem:[%s176 + $0x50] sm:$0xff] %v1881
        %1898 = vst [vmem:[%s176 + $0x58] sm:$0xff] %v1882
        %1899 = vst [vmem:[%s176 + $0x60] sm:$0xff] %v1883
        %1900 = vst [vmem:[%s176 + $0x68] sm:$0xff] %v1884
        %1901 = vst [vmem:[%s176 + $0x70] sm:$0xff] %v1885
        %1902 = vst [vmem:[%s176 + $0x78] sm:$0xff] %v1886
        %s1903 = sand.u32 %s75, 1
        %s1904 = scalar_lea.sflag [#allocation4], %s1903
        %s1905 = sand.u32 %s75, 1
        %s1906 = smul.addr %s1905, 128
        %s1907 = scalar_lea.vmem [#allocation7], %s1906
        // Predicated region
        $region37: #{tpu_custom_call.1} parent=27 // pred_check
          %p1908 = pneg %p85
        $region38: #{tpu_custom_call.1} parent=27 // pred_check_branch
          %1910 = sbr.rel (%p1908) target = $region40
        $region39: #{tpu_custom_call.1} parent=27 // pred_region
          %s1911 = smul.u32 8, %s20
          %s1913 = ssub.s32 2048, 2048
          %1914 = vsyncadd %s1904, %s1913
          %s1915 = smul.addr %s1911, 128
          %s1916 = scalar_lea.hbm %s2, %s1915
          %s1917 = sshll.u32 %s1907, 4
          %s1918 = int_to_ptr.vmem [resolvable:$true] %s1917
          %1923 = dma.vmem_to_hbm [thread:$0]  %s1918, 2048, %s1916, %s1904, 1024, 2048, 64
        $region40: #{tpu_custom_call.1} parent=27 // pred_fallthru
          _
      $region28: #{tpu_custom_call.1} parent=5 // pred_fallthru
        _
      %p1924 = scmp.le.s32.totalorder 2, %s15
      // Predicated region
      $region41: #{tpu_custom_call.1} parent=5 // pred_check
        %p1925 = pneg %p1924
      $region42: #{tpu_custom_call.1} parent=5 // pred_check_branch
        %1927 = sbr.rel (%p1925) target = $region44
      $region43: #{tpu_custom_call.1} parent=5 // pred_region
        %s1928 = ssub.s32 %s15, 2
        // Predicated region
        $region45: #{tpu_custom_call.1} parent=43 // pred_check
          %p1929 = pneg %p91
        $region46: #{tpu_custom_call.1} parent=43 // pred_check_branch
          %1931 = sbr.rel (%p1929) target = $region48
        $region47: #{tpu_custom_call.1} parent=43 // pred_region
          %s1932 = sand.u32 %s76, 1
          %s1933 = scalar_lea.sflag [#allocation4], %s1932
          %s1934 = sand.u32 %s76, 1
          %s1935 = smul.addr %s1934, 128
          %s1936 = scalar_lea.vmem [#allocation7], %s1935
          %1937 = dma.done %s1933, 2048
        $region48: #{tpu_custom_call.1} parent=43 // pred_fallthru
          _
      $region44: #{tpu_custom_call.1} parent=5 // pred_fallthru
        _
    $region6: #{tpu_custom_call.1} parent=1 // loop_footer
      %s19 = sadd.s32 1, %s15
    $region7: #{tpu_custom_call.1} parent=1 // loop_footer_branch
      %14 = sbr.rel target = $region3
    $region8: #{tpu_custom_call.1} parent=1 // loop_exit
      _
    %1938 = vsyncpa [#allocation3], 1
    %s1939 = scalar_lea.sflag [#allocation3], 1
    %1940 = vsyncpa %s1939, 1
    %1941 = vsyncpa [#allocation6], 1
    %s1942 = scalar_lea.sflag [#allocation6], 1
    %1943 = vsyncpa %s1942, 1
    %1944 = vsyncpa [#allocation4], 1
    %s1945 = scalar_lea.sflag [#allocation4], 1
    %1946 = vsyncpa %s1945, 1

</llo_original>
